<compile_context>
chip_gen: v5e
topology: v5e:2x2
jax: 0.10.0
libtpu: 0.0.40
codegen_flags: <defaults>
</compile_context>

<pallas_src>
import functools

import numpy as np
import jax
import jax.numpy as jnp
from jax import lax
from jax.experimental import pallas as pl
from jax.experimental.pallas import tpu as pltpu


def _fused_nopa_kernel(x_ref, w1_ref, w2_ref, mask_ref, o_ref,
                       xb1_ref, xb2_ref, *, H, W, K, Cin, Cmid, Cout, M):
    """Fused k4(k3(x)) for one batch element.

    x_ref    : (1, Cin, H*W)     input image, spatial flattened (lane axis)
    w1_ref   : (Cmid, K*K*Cin)   conv1 weight, last index = (kh*K+kw)*Cin+ci
    w2_ref   : (Cout, K*K*Cmid)  conv2 weight, same packing
    mask_ref : (max(2p,1), H*W)  0/1 edge masks per horizontal tap offset
    o_ref    : (1, Cout, H*W)    output (lane-dense store)
    xb1_ref  : (Cin,  H*W + 2M)  VMEM scratch: zero-margined input
    xb2_ref  : (Cmid, H*W + 2M)  VMEM scratch: zero-margined intermediate
    """
    HW = H * W
    p = (K - 1) // 2
    masks = mask_ref[...]                               # (2p, HW) 0/1 f32

    def edge_mask(dk):
        # row inside `masks` for horizontal tap offset dk != 0
        m = dk + p if dk < 0 else dk + p - 1
        return masks[m:m + 1, :]                        # (1, HW)

    def conv(src_ref, w_ref, cin, cout):
        wv = w_ref[...].astype(jnp.float32)             # (cout, K*K*cin)
        acc = jnp.zeros((cout, HW), jnp.float32)
        for kh in range(K):
            for kw in range(K):
                # Constant flat shift for this tap; the zero margins provide
                # the vertical "same" padding.
                start = M + (kh - p) * W + (kw - p)
                sh = src_ref[:, start:start + HW]       # (cin, HW) f32
                dk = kw - p
                if dk != 0:
                    # kill taps that would wrap across a row boundary
                    sh = sh * edge_mask(dk)
                for ci in range(cin):
                    j = (kh * K + kw) * cin + ci
                    # VPU broadcast-FMA: (cout,1) * (1,HW) -> (cout,HW)
                    acc = acc + wv[:, j:j + 1] * sh[ci:ci + 1, :]
        return acc

    # Stage the input image into its zero-margined flat buffer (in-kernel
    # "same" padding -- no jnp.pad / extra HBM copy).
    if M > 0:
        xb1_ref[:, 0:M] = jnp.zeros((Cin, M), jnp.float32)
        xb1_ref[:, M + HW:2 * M + HW] = jnp.zeros((Cin, M), jnp.float32)
    xb1_ref[:, M:M + HW] = x_ref[0].astype(jnp.float32)

    mid = conv(xb1_ref, w1_ref, Cin, Cmid)              # k3 output (f32)

    # Intermediate never leaves VMEM: drop it into conv2's padded buffer.
    if M > 0:
        xb2_ref[:, 0:M] = jnp.zeros((Cmid, M), jnp.float32)
        xb2_ref[:, M + HW:2 * M + HW] = jnp.zeros((Cmid, M), jnp.float32)
    xb2_ref[:, M:M + HW] = mid

    out = conv(xb2_ref, w2_ref, Cmid, Cout)             # k4 output
    o_ref[0] = out.astype(o_ref.dtype)


@jax.jit
def nopa_conv_forward(x_nchw, w3_oihw, w4_oihw):
    """NOPAConv.forward: out = k4(k3(x)).  x is NCHW like PyTorch."""
    N, Cin, H, W = x_nchw.shape
    Cmid = w3_oihw.shape[0]
    Cout = w4_oihw.shape[0]
    K = w3_oihw.shape[2]
    assert K % 2 == 1, "'same' padding math assumes odd kernel size"
    p = (K - 1) // 2
    HW = H * W

    # Zero margin around the flattened image; rounded up to a lane tile so the
    # interior copy is a lane-aligned store.
    M = p * (W + 1)
    M = ((M + 127) // 128) * 128 if M > 0 else 0
    L = HW + 2 * M

    # Free reshape (no transpose): NCHW -> (N, C, H*W), spatial on lanes.
    x_flat = x_nchw.reshape(N, Cin, HW)

    # TODO(synk): in a real model these tiny weight repacks (OIHW -> (O, K*K*I))
    # would be done once at parameter-load time, not per forward call.
    w1f = jnp.transpose(w3_oihw, (0, 2, 3, 1)).reshape(Cmid, K * K * Cin)
    w2f = jnp.transpose(w4_oihw, (0, 2, 3, 1)).reshape(Cout, K * K * Cmid)

    # 0/1 edge masks per horizontal tap offset dk in [-p..p]\{0}: zero the
    # output columns whose tap would wrap across a row boundary in the flat
    # layout.  Built with numpy -> baked in as a compile-time constant.
    col = np.arange(HW, dtype=np.int32) % W
    rows = []
    for dk in list(range(-p, 0)) + list(range(1, p + 1)):
        rows.append(((col + dk >= 0) & (col + dk < W)).astype(np.float32))
    if not rows:                                        # K == 1 degenerate case
        rows.append(np.ones((HW,), np.float32))
    edge_masks = jnp.asarray(np.stack(rows, axis=0))    # (max(2p,1), HW)

    kernel = functools.partial(
        _fused_nopa_kernel, H=H, W=W, K=K, Cin=Cin, Cmid=Cmid, Cout=Cout, M=M)

    out_flat = pl.pallas_call(
        kernel,
        out_shape=jax.ShapeDtypeStruct((N, Cout, HW), x_nchw.dtype),
        grid=(N,),
        in_specs=[
            pl.BlockSpec((1, Cin, HW), lambda n: (n, 0, 0)),
            pl.BlockSpec((Cmid, K * K * Cin), lambda n: (0, 0)),
            pl.BlockSpec((Cout, K * K * Cmid), lambda n: (0, 0)),
            pl.BlockSpec(edge_masks.shape, lambda n: (0, 0)),
        ],
        out_specs=pl.BlockSpec((1, Cout, HW), lambda n: (n, 0, 0)),
        scratch_shapes=[
            pltpu.VMEM((Cin, L), jnp.float32),
            pltpu.VMEM((Cmid, L), jnp.float32),
        ],
        compiler_params=pltpu.CompilerParams(
            dimension_semantics=("parallel",)),
    )(x_flat, w1f, w2f, edge_masks)

    return out_flat.reshape(N, Cout, H, W)


def _reference_forward(x_nchw, w3_oihw, w4_oihw):
    """Pure-JAX reference (lax conv) for correctness check."""
    dn = lax.conv_dimension_numbers(x_nchw.shape, w3_oihw.shape,
                                    ("NCHW", "OIHW", "NCHW"))
    out = lax.conv_general_dilated(x_nchw, w3_oihw, (1, 1), "SAME",
                                   dimension_numbers=dn)
    out = lax.conv_general_dilated(out, w4_oihw, (1, 1), "SAME",
                                   dimension_numbers=dn)
    return out


if __name__ == "__main__":
    nf = 4          # channels
    k_size = 3
    N, H, W = 2, 16, 16

    key = jax.random.PRNGKey(0)
    kx, k3, k4 = jax.random.split(key, 3)

    # Deterministic synthetic parameters (same shapes as nn.Conv2d weights,
    # OIHW, no bias).
    x = jax.random.normal(kx, (N, nf, H, W), dtype=jnp.float32)
    w3 = jax.random.normal(k3, (nf, nf, k_size, k_size), dtype=jnp.float32) * 0.1
    w4 = jax.random.normal(k4, (nf, nf, k_size, k_size), dtype=jnp.float32) * 0.1

    out = jax.block_until_ready(nopa_conv_forward(x, w3, w4))
    ref = jax.block_until_ready(_reference_forward(x, w3, w4))

    assert out.shape == (N, nf, H, W), out.shape
    assert jnp.allclose(out, ref, atol=1e-4, rtol=1e-4), \
        float(jnp.max(jnp.abs(out - ref)))

    print("KERNEL_OK")
</pallas_src>

<mosaic_0001>
module attributes {stable_mosaic.version = 11 : i64} {
  func.func @_fused_nopa_kernel(%arg0: i32, %arg1: memref<1x4x256xf32, #tpu.memory_space<vmem>>, %arg2: memref<4x36xf32, #tpu.memory_space<vmem>>, %arg3: memref<4x36xf32, #tpu.memory_space<vmem>>, %arg4: memref<2x256xf32, #tpu.memory_space<vmem>>, %arg5: memref<1x4x256xf32, #tpu.memory_space<vmem>>, %arg6: memref<4x512xf32, #tpu.memory_space<vmem>>, %arg7: memref<4x512xf32, #tpu.memory_space<vmem>>) attributes {dimension_semantics = [#tpu.dimension_semantics<parallel>], iteration_bounds = array<i64: 2>, scalar_prefetch = 0 : i64, scratch_operands = 2 : i64, tpu.core_type = #tpu.core_type<tc>, window_params = [{transform_indices = @transform_0, window_bounds = array<i64: 1, 4, 256>}, {pipeline_mode = #tpu.pipeline_mode<synchronous>, transform_indices = @transform_1, window_bounds = array<i64: 4, 36>}, {pipeline_mode = #tpu.pipeline_mode<synchronous>, transform_indices = @transform_2, window_bounds = array<i64: 4, 36>}, {pipeline_mode = #tpu.pipeline_mode<synchronous>, transform_indices = @transform_3, window_bounds = array<i64: 2, 256>}, {transform_indices = @transform_4, window_bounds = array<i64: 1, 4, 256>}]} {
    %c0 = arith.constant 0 : index
    %c0_0 = arith.constant 0 : index
    %0 = vector.load %arg4[%c0, %c0_0] : memref<2x256xf32, #tpu.memory_space<vmem>>, vector<2x256xf32>
    %cst = arith.constant 0.000000e+00 : f32
    %1 = vector.broadcast %cst : f32 to vector<4x128xf32>
    %c0_1 = arith.constant 0 : index
    %c0_2 = arith.constant 0 : index
    %2 = vector.load %arg6[%c0_1, %c0_2] : memref<4x512xf32, #tpu.memory_space<vmem>>, vector<4x128xf32>
    tpu.vector_store %arg6[%c0_1, %c0_2], %1 {strides = array<i32>} : memref<4x512xf32, #tpu.memory_space<vmem>>, vector<4x128xf32>,
    %cst_3 = arith.constant 0.000000e+00 : f32
    %3 = vector.broadcast %cst_3 : f32 to vector<4x128xf32>
    %c0_4 = arith.constant 0 : index
    %c384 = arith.constant 384 : index
    %4 = vector.load %arg6[%c0_4, %c384] : memref<4x512xf32, #tpu.memory_space<vmem>>, vector<4x128xf32>
    tpu.vector_store %arg6[%c0_4, %c384], %3 {strides = array<i32>} : memref<4x512xf32, #tpu.memory_space<vmem>>, vector<4x128xf32>,
    %c0_5 = arith.constant 0 : index
    %c0_6 = arith.constant 0 : index
    %c0_7 = arith.constant 0 : index
    %5 = vector.load %arg1[%c0_5, %c0_6, %c0_7] : memref<1x4x256xf32, #tpu.memory_space<vmem>>, vector<1x4x256xf32>
    %6 = vector.shape_cast %5 : vector<1x4x256xf32> to vector<4x256xf32>
    %c0_8 = arith.constant 0 : index
    %c128 = arith.constant 128 : index
    %7 = vector.load %arg6[%c0_8, %c128] : memref<4x512xf32, #tpu.memory_space<vmem>>, vector<4x256xf32>
    tpu.vector_store %arg6[%c0_8, %c128], %6 {strides = array<i32>} : memref<4x512xf32, #tpu.memory_space<vmem>>, vector<4x256xf32>,
    %c0_9 = arith.constant 0 : index
    %c0_10 = arith.constant 0 : index
    %8 = vector.load %arg2[%c0_9, %c0_10] : memref<4x36xf32, #tpu.memory_space<vmem>>, vector<4x36xf32>
    %cst_11 = arith.constant 0.000000e+00 : f32
    %9 = vector.broadcast %cst_11 : f32 to vector<4x256xf32>
    %c0_12 = arith.constant 0 : index
    %c111 = arith.constant 111 : index
    %10 = vector.load %arg6[%c0_12, %c111] : memref<4x512xf32, #tpu.memory_space<vmem>>, vector<4x256xf32>
    %11 = vector.extract_strided_slice %0 {offsets = [0, 0], sizes = [1, 256], strides = [1, 1]} : vector<2x256xf32> to vector<1x256xf32>
    %12 = vector.broadcast %11 : vector<1x256xf32> to vector<4x256xf32>
    %13 = arith.mulf %10, %12 : vector<4x256xf32>
    %14 = vector.extract_strided_slice %8 {offsets = [0, 0], sizes = [4, 1], strides = [1, 1]} : vector<4x36xf32> to vector<4x1xf32>
    %15 = vector.extract_strided_slice %13 {offsets = [0, 0], sizes = [1, 256], strides = [1, 1]} : vector<4x256xf32> to vector<1x256xf32>
    %16 = vector.broadcast %14 : vector<4x1xf32> to vector<4x256xf32>
    %17 = vector.broadcast %15 : vector<1x256xf32> to vector<4x256xf32>
    %18 = arith.mulf %16, %17 : vector<4x256xf32>
    %19 = arith.addf %9, %18 : vector<4x256xf32>
    %20 = vector.extract_strided_slice %8 {offsets = [0, 1], sizes = [4, 1], strides = [1, 1]} : vector<4x36xf32> to vector<4x1xf32>
    %21 = vector.extract_strided_slice %13 {offsets = [1, 0], sizes = [1, 256], strides = [1, 1]} : vector<4x256xf32> to vector<1x256xf32>
    %22 = vector.broadcast %20 : vector<4x1xf32> to vector<4x256xf32>
    %23 = vector.broadcast %21 : vector<1x256xf32> to vector<4x256xf32>
    %24 = arith.mulf %22, %23 : vector<4x256xf32>
    %25 = arith.addf %19, %24 : vector<4x256xf32>
    %26 = vector.extract_strided_slice %8 {offsets = [0, 2], sizes = [4, 1], strides = [1, 1]} : vector<4x36xf32> to vector<4x1xf32>
    %27 = vector.extract_strided_slice %13 {offsets = [2, 0], sizes = [1, 256], strides = [1, 1]} : vector<4x256xf32> to vector<1x256xf32>
    %28 = vector.broadcast %26 : vector<4x1xf32> to vector<4x256xf32>
    %29 = vector.broadcast %27 : vector<1x256xf32> to vector<4x256xf32>
    %30 = arith.mulf %28, %29 : vector<4x256xf32>
    %31 = arith.addf %25, %30 : vector<4x256xf32>
    %32 = vector.extract_strided_slice %8 {offsets = [0, 3], sizes = [4, 1], strides = [1, 1]} : vector<4x36xf32> to vector<4x1xf32>
    %33 = vector.extract_strided_slice %13 {offsets = [3, 0], sizes = [1, 256], strides = [1, 1]} : vector<4x256xf32> to vector<1x256xf32>
    %34 = vector.broadcast %32 : vector<4x1xf32> to vector<4x256xf32>
    %35 = vector.broadcast %33 : vector<1x256xf32> to vector<4x256xf32>
    %36 = arith.mulf %34, %35 : vector<4x256xf32>
    %37 = arith.addf %31, %36 : vector<4x256xf32>
    %c0_13 = arith.constant 0 : index
    %c112 = arith.constant 112 : index
    %38 = vector.load %arg6[%c0_13, %c112] : memref<4x512xf32, #tpu.memory_space<vmem>>, vector<4x256xf32>
    %39 = vector.extract_strided_slice %8 {offsets = [0, 4], sizes = [4, 1], strides = [1, 1]} : vector<4x36xf32> to vector<4x1xf32>
    %40 = vector.extract_strided_slice %38 {offsets = [0, 0], sizes = [1, 256], strides = [1, 1]} : vector<4x256xf32> to vector<1x256xf32>
    %41 = vector.broadcast %39 : vector<4x1xf32> to vector<4x256xf32>
    %42 = vector.broadcast %40 : vector<1x256xf32> to vector<4x256xf32>
    %43 = arith.mulf %41, %42 : vector<4x256xf32>
    %44 = arith.addf %37, %43 : vector<4x256xf32>
    %45 = vector.extract_strided_slice %8 {offsets = [0, 5], sizes = [4, 1], strides = [1, 1]} : vector<4x36xf32> to vector<4x1xf32>
    %46 = vector.extract_strided_slice %38 {offsets = [1, 0], sizes = [1, 256], strides = [1, 1]} : vector<4x256xf32> to vector<1x256xf32>
    %47 = vector.broadcast %45 : vector<4x1xf32> to vector<4x256xf32>
    %48 = vector.broadcast %46 : vector<1x256xf32> to vector<4x256xf32>
    %49 = arith.mulf %47, %48 : vector<4x256xf32>
    %50 = arith.addf %44, %49 : vector<4x256xf32>
    %51 = vector.extract_strided_slice %8 {offsets = [0, 6], sizes = [4, 1], strides = [1, 1]} : vector<4x36xf32> to vector<4x1xf32>
    %52 = vector.extract_strided_slice %38 {offsets = [2, 0], sizes = [1, 256], strides = [1, 1]} : vector<4x256xf32> to vector<1x256xf32>
    %53 = vector.broadcast %51 : vector<4x1xf32> to vector<4x256xf32>
    %54 = vector.broadcast %52 : vector<1x256xf32> to vector<4x256xf32>
    %55 = arith.mulf %53, %54 : vector<4x256xf32>
    %56 = arith.addf %50, %55 : vector<4x256xf32>
    %57 = vector.extract_strided_slice %8 {offsets = [0, 7], sizes = [4, 1], strides = [1, 1]} : vector<4x36xf32> to vector<4x1xf32>
    %58 = vector.extract_strided_slice %38 {offsets = [3, 0], sizes = [1, 256], strides = [1, 1]} : vector<4x256xf32> to vector<1x256xf32>
    %59 = vector.broadcast %57 : vector<4x1xf32> to vector<4x256xf32>
    %60 = vector.broadcast %58 : vector<1x256xf32> to vector<4x256xf32>
    %61 = arith.mulf %59, %60 : vector<4x256xf32>
    %62 = arith.addf %56, %61 : vector<4x256xf32>
    %c0_14 = arith.constant 0 : index
    %c113 = arith.constant 113 : index
    %63 = vector.load %arg6[%c0_14, %c113] : memref<4x512xf32, #tpu.memory_space<vmem>>, vector<4x256xf32>
    %64 = vector.extract_strided_slice %0 {offsets = [1, 0], sizes = [1, 256], strides = [1, 1]} : vector<2x256xf32> to vector<1x256xf32>
    %65 = vector.broadcast %64 : vector<1x256xf32> to vector<4x256xf32>
    %66 = arith.mulf %63, %65 : vector<4x256xf32>
    %67 = vector.extract_strided_slice %8 {offsets = [0, 8], sizes = [4, 1], strides = [1, 1]} : vector<4x36xf32> to vector<4x1xf32>
    %68 = vector.extract_strided_slice %66 {offsets = [0, 0], sizes = [1, 256], strides = [1, 1]} : vector<4x256xf32> to vector<1x256xf32>
    %69 = vector.broadcast %67 : vector<4x1xf32> to vector<4x256xf32>
    %70 = vector.broadcast %68 : vector<1x256xf32> to vector<4x256xf32>
    %71 = arith.mulf %69, %70 : vector<4x256xf32>
    %72 = arith.addf %62, %71 : vector<4x256xf32>
    %73 = vector.extract_strided_slice %8 {offsets = [0, 9], sizes = [4, 1], strides = [1, 1]} : vector<4x36xf32> to vector<4x1xf32>
    %74 = vector.extract_strided_slice %66 {offsets = [1, 0], sizes = [1, 256], strides = [1, 1]} : vector<4x256xf32> to vector<1x256xf32>
    %75 = vector.broadcast %73 : vector<4x1xf32> to vector<4x256xf32>
    %76 = vector.broadcast %74 : vector<1x256xf32> to vector<4x256xf32>
    %77 = arith.mulf %75, %76 : vector<4x256xf32>
    %78 = arith.addf %72, %77 : vector<4x256xf32>
    %79 = vector.extract_strided_slice %8 {offsets = [0, 10], sizes = [4, 1], strides = [1, 1]} : vector<4x36xf32> to vector<4x1xf32>
    %80 = vector.extract_strided_slice %66 {offsets = [2, 0], sizes = [1, 256], strides = [1, 1]} : vector<4x256xf32> to vector<1x256xf32>
    %81 = vector.broadcast %79 : vector<4x1xf32> to vector<4x256xf32>
    %82 = vector.broadcast %80 : vector<1x256xf32> to vector<4x256xf32>
    %83 = arith.mulf %81, %82 : vector<4x256xf32>
    %84 = arith.addf %78, %83 : vector<4x256xf32>
    %85 = vector.extract_strided_slice %8 {offsets = [0, 11], sizes = [4, 1], strides = [1, 1]} : vector<4x36xf32> to vector<4x1xf32>
    %86 = vector.extract_strided_slice %66 {offsets = [3, 0], sizes = [1, 256], strides = [1, 1]} : vector<4x256xf32> to vector<1x256xf32>
    %87 = vector.broadcast %85 : vector<4x1xf32> to vector<4x256xf32>
    %88 = vector.broadcast %86 : vector<1x256xf32> to vector<4x256xf32>
    %89 = arith.mulf %87, %88 : vector<4x256xf32>
    %90 = arith.addf %84, %89 : vector<4x256xf32>
    %c0_15 = arith.constant 0 : index
    %c127 = arith.constant 127 : index
    %91 = vector.load %arg6[%c0_15, %c127] : memref<4x512xf32, #tpu.memory_space<vmem>>, vector<4x256xf32>
    %92 = vector.extract_strided_slice %0 {offsets = [0, 0], sizes = [1, 256], strides = [1, 1]} : vector<2x256xf32> to vector<1x256xf32>
    %93 = vector.broadcast %92 : vector<1x256xf32> to vector<4x256xf32>
    %94 = arith.mulf %91, %93 : vector<4x256xf32>
    %95 = vector.extract_strided_slice %8 {offsets = [0, 12], sizes = [4, 1], strides = [1, 1]} : vector<4x36xf32> to vector<4x1xf32>
    %96 = vector.extract_strided_slice %94 {offsets = [0, 0], sizes = [1, 256], strides = [1, 1]} : vector<4x256xf32> to vector<1x256xf32>
    %97 = vector.broadcast %95 : vector<4x1xf32> to vector<4x256xf32>
    %98 = vector.broadcast %96 : vector<1x256xf32> to vector<4x256xf32>
    %99 = arith.mulf %97, %98 : vector<4x256xf32>
    %100 = arith.addf %90, %99 : vector<4x256xf32>
    %101 = vector.extract_strided_slice %8 {offsets = [0, 13], sizes = [4, 1], strides = [1, 1]} : vector<4x36xf32> to vector<4x1xf32>
    %102 = vector.extract_strided_slice %94 {offsets = [1, 0], sizes = [1, 256], strides = [1, 1]} : vector<4x256xf32> to vector<1x256xf32>
    %103 = vector.broadcast %101 : vector<4x1xf32> to vector<4x256xf32>
    %104 = vector.broadcast %102 : vector<1x256xf32> to vector<4x256xf32>
    %105 = arith.mulf %103, %104 : vector<4x256xf32>
    %106 = arith.addf %100, %105 : vector<4x256xf32>
    %107 = vector.extract_strided_slice %8 {offsets = [0, 14], sizes = [4, 1], strides = [1, 1]} : vector<4x36xf32> to vector<4x1xf32>
    %108 = vector.extract_strided_slice %94 {offsets = [2, 0], sizes = [1, 256], strides = [1, 1]} : vector<4x256xf32> to vector<1x256xf32>
    %109 = vector.broadcast %107 : vector<4x1xf32> to vector<4x256xf32>
    %110 = vector.broadcast %108 : vector<1x256xf32> to vector<4x256xf32>
    %111 = arith.mulf %109, %110 : vector<4x256xf32>
    %112 = arith.addf %106, %111 : vector<4x256xf32>
    %113 = vector.extract_strided_slice %8 {offsets = [0, 15], sizes = [4, 1], strides = [1, 1]} : vector<4x36xf32> to vector<4x1xf32>
    %114 = vector.extract_strided_slice %94 {offsets = [3, 0], sizes = [1, 256], strides = [1, 1]} : vector<4x256xf32> to vector<1x256xf32>
    %115 = vector.broadcast %113 : vector<4x1xf32> to vector<4x256xf32>
    %116 = vector.broadcast %114 : vector<1x256xf32> to vector<4x256xf32>
    %117 = arith.mulf %115, %116 : vector<4x256xf32>
    %118 = arith.addf %112, %117 : vector<4x256xf32>
    %c0_16 = arith.constant 0 : index
    %c128_17 = arith.constant 128 : index
    %119 = vector.load %arg6[%c0_16, %c128_17] : memref<4x512xf32, #tpu.memory_space<vmem>>, vector<4x256xf32>
    %120 = vector.extract_strided_slice %8 {offsets = [0, 16], sizes = [4, 1], strides = [1, 1]} : vector<4x36xf32> to vector<4x1xf32>
    %121 = vector.extract_strided_slice %119 {offsets = [0, 0], sizes = [1, 256], strides = [1, 1]} : vector<4x256xf32> to vector<1x256xf32>
    %122 = vector.broadcast %120 : vector<4x1xf32> to vector<4x256xf32>
    %123 = vector.broadcast %121 : vector<1x256xf32> to vector<4x256xf32>
    %124 = arith.mulf %122, %123 : vector<4x256xf32>
    %125 = arith.addf %118, %124 : vector<4x256xf32>
    %126 = vector.extract_strided_slice %8 {offsets = [0, 17], sizes = [4, 1], strides = [1, 1]} : vector<4x36xf32> to vector<4x1xf32>
    %127 = vector.extract_strided_slice %119 {offsets = [1, 0], sizes = [1, 256], strides = [1, 1]} : vector<4x256xf32> to vector<1x256xf32>
    %128 = vector.broadcast %126 : vector<4x1xf32> to vector<4x256xf32>
    %129 = vector.broadcast %127 : vector<1x256xf32> to vector<4x256xf32>
    %130 = arith.mulf %128, %129 : vector<4x256xf32>
    %131 = arith.addf %125, %130 : vector<4x256xf32>
    %132 = vector.extract_strided_slice %8 {offsets = [0, 18], sizes = [4, 1], strides = [1, 1]} : vector<4x36xf32> to vector<4x1xf32>
    %133 = vector.extract_strided_slice %119 {offsets = [2, 0], sizes = [1, 256], strides = [1, 1]} : vector<4x256xf32> to vector<1x256xf32>
    %134 = vector.broadcast %132 : vector<4x1xf32> to vector<4x256xf32>
    %135 = vector.broadcast %133 : vector<1x256xf32> to vector<4x256xf32>
    %136 = arith.mulf %134, %135 : vector<4x256xf32>
    %137 = arith.addf %131, %136 : vector<4x256xf32>
    %138 = vector.extract_strided_slice %8 {offsets = [0, 19], sizes = [4, 1], strides = [1, 1]} : vector<4x36xf32> to vector<4x1xf32>
    %139 = vector.extract_strided_slice %119 {offsets = [3, 0], sizes = [1, 256], strides = [1, 1]} : vector<4x256xf32> to vector<1x256xf32>
    %140 = vector.broadcast %138 : vector<4x1xf32> to vector<4x256xf32>
    %141 = vector.broadcast %139 : vector<1x256xf32> to vector<4x256xf32>
    %142 = arith.mulf %140, %141 : vector<4x256xf32>
    %143 = arith.addf %137, %142 : vector<4x256xf32>
    %c0_18 = arith.constant 0 : index
    %c129 = arith.constant 129 : index
    %144 = vector.load %arg6[%c0_18, %c129] : memref<4x512xf32, #tpu.memory_space<vmem>>, vector<4x256xf32>
    %145 = vector.extract_strided_slice %0 {offsets = [1, 0], sizes = [1, 256], strides = [1, 1]} : vector<2x256xf32> to vector<1x256xf32>
    %146 = vector.broadcast %145 : vector<1x256xf32> to vector<4x256xf32>
    %147 = arith.mulf %144, %146 : vector<4x256xf32>
    %148 = vector.extract_strided_slice %8 {offsets = [0, 20], sizes = [4, 1], strides = [1, 1]} : vector<4x36xf32> to vector<4x1xf32>
    %149 = vector.extract_strided_slice %147 {offsets = [0, 0], sizes = [1, 256], strides = [1, 1]} : vector<4x256xf32> to vector<1x256xf32>
    %150 = vector.broadcast %148 : vector<4x1xf32> to vector<4x256xf32>
    %151 = vector.broadcast %149 : vector<1x256xf32> to vector<4x256xf32>
    %152 = arith.mulf %150, %151 : vector<4x256xf32>
    %153 = arith.addf %143, %152 : vector<4x256xf32>
    %154 = vector.extract_strided_slice %8 {offsets = [0, 21], sizes = [4, 1], strides = [1, 1]} : vector<4x36xf32> to vector<4x1xf32>
    %155 = vector.extract_strided_slice %147 {offsets = [1, 0], sizes = [1, 256], strides = [1, 1]} : vector<4x256xf32> to vector<1x256xf32>
    %156 = vector.broadcast %154 : vector<4x1xf32> to vector<4x256xf32>
    %157 = vector.broadcast %155 : vector<1x256xf32> to vector<4x256xf32>
    %158 = arith.mulf %156, %157 : vector<4x256xf32>
    %159 = arith.addf %153, %158 : vector<4x256xf32>
    %160 = vector.extract_strided_slice %8 {offsets = [0, 22], sizes = [4, 1], strides = [1, 1]} : vector<4x36xf32> to vector<4x1xf32>
    %161 = vector.extract_strided_slice %147 {offsets = [2, 0], sizes = [1, 256], strides = [1, 1]} : vector<4x256xf32> to vector<1x256xf32>
    %162 = vector.broadcast %160 : vector<4x1xf32> to vector<4x256xf32>
    %163 = vector.broadcast %161 : vector<1x256xf32> to vector<4x256xf32>
    %164 = arith.mulf %162, %163 : vector<4x256xf32>
    %165 = arith.addf %159, %164 : vector<4x256xf32>
    %166 = vector.extract_strided_slice %8 {offsets = [0, 23], sizes = [4, 1], strides = [1, 1]} : vector<4x36xf32> to vector<4x1xf32>
    %167 = vector.extract_strided_slice %147 {offsets = [3, 0], sizes = [1, 256], strides = [1, 1]} : vector<4x256xf32> to vector<1x256xf32>
    %168 = vector.broadcast %166 : vector<4x1xf32> to vector<4x256xf32>
    %169 = vector.broadcast %167 : vector<1x256xf32> to vector<4x256xf32>
    %170 = arith.mulf %168, %169 : vector<4x256xf32>
    %171 = arith.addf %165, %170 : vector<4x256xf32>
    %c0_19 = arith.constant 0 : index
    %c143 = arith.constant 143 : index
    %172 = vector.load %arg6[%c0_19, %c143] : memref<4x512xf32, #tpu.memory_space<vmem>>, vector<4x256xf32>
    %173 = vector.extract_strided_slice %0 {offsets = [0, 0], sizes = [1, 256], strides = [1, 1]} : vector<2x256xf32> to vector<1x256xf32>
    %174 = vector.broadcast %173 : vector<1x256xf32> to vector<4x256xf32>
    %175 = arith.mulf %172, %174 : vector<4x256xf32>
    %176 = vector.extract_strided_slice %8 {offsets = [0, 24], sizes = [4, 1], strides = [1, 1]} : vector<4x36xf32> to vector<4x1xf32>
    %177 = vector.extract_strided_slice %175 {offsets = [0, 0], sizes = [1, 256], strides = [1, 1]} : vector<4x256xf32> to vector<1x256xf32>
    %178 = vector.broadcast %176 : vector<4x1xf32> to vector<4x256xf32>
    %179 = vector.broadcast %177 : vector<1x256xf32> to vector<4x256xf32>
    %180 = arith.mulf %178, %179 : vector<4x256xf32>
    %181 = arith.addf %171, %180 : vector<4x256xf32>
    %182 = vector.extract_strided_slice %8 {offsets = [0, 25], sizes = [4, 1], strides = [1, 1]} : vector<4x36xf32> to vector<4x1xf32>
    %183 = vector.extract_strided_slice %175 {offsets = [1, 0], sizes = [1, 256], strides = [1, 1]} : vector<4x256xf32> to vector<1x256xf32>
    %184 = vector.broadcast %182 : vector<4x1xf32> to vector<4x256xf32>
    %185 = vector.broadcast %183 : vector<1x256xf32> to vector<4x256xf32>
    %186 = arith.mulf %184, %185 : vector<4x256xf32>
    %187 = arith.addf %181, %186 : vector<4x256xf32>
    %188 = vector.extract_strided_slice %8 {offsets = [0, 26], sizes = [4, 1], strides = [1, 1]} : vector<4x36xf32> to vector<4x1xf32>
    %189 = vector.extract_strided_slice %175 {offsets = [2, 0], sizes = [1, 256], strides = [1, 1]} : vector<4x256xf32> to vector<1x256xf32>
    %190 = vector.broadcast %188 : vector<4x1xf32> to vector<4x256xf32>
    %191 = vector.broadcast %189 : vector<1x256xf32> to vector<4x256xf32>
    %192 = arith.mulf %190, %191 : vector<4x256xf32>
    %193 = arith.addf %187, %192 : vector<4x256xf32>
    %194 = vector.extract_strided_slice %8 {offsets = [0, 27], sizes = [4, 1], strides = [1, 1]} : vector<4x36xf32> to vector<4x1xf32>
    %195 = vector.extract_strided_slice %175 {offsets = [3, 0], sizes = [1, 256], strides = [1, 1]} : vector<4x256xf32> to vector<1x256xf32>
    %196 = vector.broadcast %194 : vector<4x1xf32> to vector<4x256xf32>
    %197 = vector.broadcast %195 : vector<1x256xf32> to vector<4x256xf32>
    %198 = arith.mulf %196, %197 : vector<4x256xf32>
    %199 = arith.addf %193, %198 : vector<4x256xf32>
    %c0_20 = arith.constant 0 : index
    %c144 = arith.constant 144 : index
    %200 = vector.load %arg6[%c0_20, %c144] : memref<4x512xf32, #tpu.memory_space<vmem>>, vector<4x256xf32>
    %201 = vector.extract_strided_slice %8 {offsets = [0, 28], sizes = [4, 1], strides = [1, 1]} : vector<4x36xf32> to vector<4x1xf32>
    %202 = vector.extract_strided_slice %200 {offsets = [0, 0], sizes = [1, 256], strides = [1, 1]} : vector<4x256xf32> to vector<1x256xf32>
    %203 = vector.broadcast %201 : vector<4x1xf32> to vector<4x256xf32>
    %204 = vector.broadcast %202 : vector<1x256xf32> to vector<4x256xf32>
    %205 = arith.mulf %203, %204 : vector<4x256xf32>
    %206 = arith.addf %199, %205 : vector<4x256xf32>
    %207 = vector.extract_strided_slice %8 {offsets = [0, 29], sizes = [4, 1], strides = [1, 1]} : vector<4x36xf32> to vector<4x1xf32>
    %208 = vector.extract_strided_slice %200 {offsets = [1, 0], sizes = [1, 256], strides = [1, 1]} : vector<4x256xf32> to vector<1x256xf32>
    %209 = vector.broadcast %207 : vector<4x1xf32> to vector<4x256xf32>
    %210 = vector.broadcast %208 : vector<1x256xf32> to vector<4x256xf32>
    %211 = arith.mulf %209, %210 : vector<4x256xf32>
    %212 = arith.addf %206, %211 : vector<4x256xf32>
    %213 = vector.extract_strided_slice %8 {offsets = [0, 30], sizes = [4, 1], strides = [1, 1]} : vector<4x36xf32> to vector<4x1xf32>
    %214 = vector.extract_strided_slice %200 {offsets = [2, 0], sizes = [1, 256], strides = [1, 1]} : vector<4x256xf32> to vector<1x256xf32>
    %215 = vector.broadcast %213 : vector<4x1xf32> to vector<4x256xf32>
    %216 = vector.broadcast %214 : vector<1x256xf32> to vector<4x256xf32>
    %217 = arith.mulf %215, %216 : vector<4x256xf32>
    %218 = arith.addf %212, %217 : vector<4x256xf32>
    %219 = vector.extract_strided_slice %8 {offsets = [0, 31], sizes = [4, 1], strides = [1, 1]} : vector<4x36xf32> to vector<4x1xf32>
    %220 = vector.extract_strided_slice %200 {offsets = [3, 0], sizes = [1, 256], strides = [1, 1]} : vector<4x256xf32> to vector<1x256xf32>
    %221 = vector.broadcast %219 : vector<4x1xf32> to vector<4x256xf32>
    %222 = vector.broadcast %220 : vector<1x256xf32> to vector<4x256xf32>
    %223 = arith.mulf %221, %222 : vector<4x256xf32>
    %224 = arith.addf %218, %223 : vector<4x256xf32>
    %c0_21 = arith.constant 0 : index
    %c145 = arith.constant 145 : index
    %225 = vector.load %arg6[%c0_21, %c145] : memref<4x512xf32, #tpu.memory_space<vmem>>, vector<4x256xf32>
    %226 = vector.extract_strided_slice %0 {offsets = [1, 0], sizes = [1, 256], strides = [1, 1]} : vector<2x256xf32> to vector<1x256xf32>
    %227 = vector.broadcast %226 : vector<1x256xf32> to vector<4x256xf32>
    %228 = arith.mulf %225, %227 : vector<4x256xf32>
    %229 = vector.extract_strided_slice %8 {offsets = [0, 32], sizes = [4, 1], strides = [1, 1]} : vector<4x36xf32> to vector<4x1xf32>
    %230 = vector.extract_strided_slice %228 {offsets = [0, 0], sizes = [1, 256], strides = [1, 1]} : vector<4x256xf32> to vector<1x256xf32>
    %231 = vector.broadcast %229 : vector<4x1xf32> to vector<4x256xf32>
    %232 = vector.broadcast %230 : vector<1x256xf32> to vector<4x256xf32>
    %233 = arith.mulf %231, %232 : vector<4x256xf32>
    %234 = arith.addf %224, %233 : vector<4x256xf32>
    %235 = vector.extract_strided_slice %8 {offsets = [0, 33], sizes = [4, 1], strides = [1, 1]} : vector<4x36xf32> to vector<4x1xf32>
    %236 = vector.extract_strided_slice %228 {offsets = [1, 0], sizes = [1, 256], strides = [1, 1]} : vector<4x256xf32> to vector<1x256xf32>
    %237 = vector.broadcast %235 : vector<4x1xf32> to vector<4x256xf32>
    %238 = vector.broadcast %236 : vector<1x256xf32> to vector<4x256xf32>
    %239 = arith.mulf %237, %238 : vector<4x256xf32>
    %240 = arith.addf %234, %239 : vector<4x256xf32>
    %241 = vector.extract_strided_slice %8 {offsets = [0, 34], sizes = [4, 1], strides = [1, 1]} : vector<4x36xf32> to vector<4x1xf32>
    %242 = vector.extract_strided_slice %228 {offsets = [2, 0], sizes = [1, 256], strides = [1, 1]} : vector<4x256xf32> to vector<1x256xf32>
    %243 = vector.broadcast %241 : vector<4x1xf32> to vector<4x256xf32>
    %244 = vector.broadcast %242 : vector<1x256xf32> to vector<4x256xf32>
    %245 = arith.mulf %243, %244 : vector<4x256xf32>
    %246 = arith.addf %240, %245 : vector<4x256xf32>
    %247 = vector.extract_strided_slice %8 {offsets = [0, 35], sizes = [4, 1], strides = [1, 1]} : vector<4x36xf32> to vector<4x1xf32>
    %248 = vector.extract_strided_slice %228 {offsets = [3, 0], sizes = [1, 256], strides = [1, 1]} : vector<4x256xf32> to vector<1x256xf32>
    %249 = vector.broadcast %247 : vector<4x1xf32> to vector<4x256xf32>
    %250 = vector.broadcast %248 : vector<1x256xf32> to vector<4x256xf32>
    %251 = arith.mulf %249, %250 : vector<4x256xf32>
    %252 = arith.addf %246, %251 : vector<4x256xf32>
    %cst_22 = arith.constant 0.000000e+00 : f32
    %253 = vector.broadcast %cst_22 : f32 to vector<4x128xf32>
    %c0_23 = arith.constant 0 : index
    %c0_24 = arith.constant 0 : index
    %254 = vector.load %arg7[%c0_23, %c0_24] : memref<4x512xf32, #tpu.memory_space<vmem>>, vector<4x128xf32>
    tpu.vector_store %arg7[%c0_23, %c0_24], %253 {strides = array<i32>} : memref<4x512xf32, #tpu.memory_space<vmem>>, vector<4x128xf32>,
    %cst_25 = arith.constant 0.000000e+00 : f32
    %255 = vector.broadcast %cst_25 : f32 to vector<4x128xf32>
    %c0_26 = arith.constant 0 : index
    %c384_27 = arith.constant 384 : index
    %256 = vector.load %arg7[%c0_26, %c384_27] : memref<4x512xf32, #tpu.memory_space<vmem>>, vector<4x128xf32>
    tpu.vector_store %arg7[%c0_26, %c384_27], %255 {strides = array<i32>} : memref<4x512xf32, #tpu.memory_space<vmem>>, vector<4x128xf32>,
    %c0_28 = arith.constant 0 : index
    %c128_29 = arith.constant 128 : index
    %257 = vector.load %arg7[%c0_28, %c128_29] : memref<4x512xf32, #tpu.memory_space<vmem>>, vector<4x256xf32>
    tpu.vector_store %arg7[%c0_28, %c128_29], %252 {strides = array<i32>} : memref<4x512xf32, #tpu.memory_space<vmem>>, vector<4x256xf32>,
    %c0_30 = arith.constant 0 : index
    %c0_31 = arith.constant 0 : index
    %258 = vector.load %arg3[%c0_30, %c0_31] : memref<4x36xf32, #tpu.memory_space<vmem>>, vector<4x36xf32>
    %cst_32 = arith.constant 0.000000e+00 : f32
    %259 = vector.broadcast %cst_32 : f32 to vector<4x256xf32>
    %c0_33 = arith.constant 0 : index
    %c111_34 = arith.constant 111 : index
    %260 = vector.load %arg7[%c0_33, %c111_34] : memref<4x512xf32, #tpu.memory_space<vmem>>, vector<4x256xf32>
    %261 = vector.extract_strided_slice %0 {offsets = [0, 0], sizes = [1, 256], strides = [1, 1]} : vector<2x256xf32> to vector<1x256xf32>
    %262 = vector.broadcast %261 : vector<1x256xf32> to vector<4x256xf32>
    %263 = arith.mulf %260, %262 : vector<4x256xf32>
    %264 = vector.extract_strided_slice %258 {offsets = [0, 0], sizes = [4, 1], strides = [1, 1]} : vector<4x36xf32> to vector<4x1xf32>
    %265 = vector.extract_strided_slice %263 {offsets = [0, 0], sizes = [1, 256], strides = [1, 1]} : vector<4x256xf32> to vector<1x256xf32>
    %266 = vector.broadcast %264 : vector<4x1xf32> to vector<4x256xf32>
    %267 = vector.broadcast %265 : vector<1x256xf32> to vector<4x256xf32>
    %268 = arith.mulf %266, %267 : vector<4x256xf32>
    %269 = arith.addf %259, %268 : vector<4x256xf32>
    %270 = vector.extract_strided_slice %258 {offsets = [0, 1], sizes = [4, 1], strides = [1, 1]} : vector<4x36xf32> to vector<4x1xf32>
    %271 = vector.extract_strided_slice %263 {offsets = [1, 0], sizes = [1, 256], strides = [1, 1]} : vector<4x256xf32> to vector<1x256xf32>
    %272 = vector.broadcast %270 : vector<4x1xf32> to vector<4x256xf32>
    %273 = vector.broadcast %271 : vector<1x256xf32> to vector<4x256xf32>
    %274 = arith.mulf %272, %273 : vector<4x256xf32>
    %275 = arith.addf %269, %274 : vector<4x256xf32>
    %276 = vector.extract_strided_slice %258 {offsets = [0, 2], sizes = [4, 1], strides = [1, 1]} : vector<4x36xf32> to vector<4x1xf32>
    %277 = vector.extract_strided_slice %263 {offsets = [2, 0], sizes = [1, 256], strides = [1, 1]} : vector<4x256xf32> to vector<1x256xf32>
    %278 = vector.broadcast %276 : vector<4x1xf32> to vector<4x256xf32>
    %279 = vector.broadcast %277 : vector<1x256xf32> to vector<4x256xf32>
    %280 = arith.mulf %278, %279 : vector<4x256xf32>
    %281 = arith.addf %275, %280 : vector<4x256xf32>
    %282 = vector.extract_strided_slice %258 {offsets = [0, 3], sizes = [4, 1], strides = [1, 1]} : vector<4x36xf32> to vector<4x1xf32>
    %283 = vector.extract_strided_slice %263 {offsets = [3, 0], sizes = [1, 256], strides = [1, 1]} : vector<4x256xf32> to vector<1x256xf32>
    %284 = vector.broadcast %282 : vector<4x1xf32> to vector<4x256xf32>
    %285 = vector.broadcast %283 : vector<1x256xf32> to vector<4x256xf32>
    %286 = arith.mulf %284, %285 : vector<4x256xf32>
    %287 = arith.addf %281, %286 : vector<4x256xf32>
    %c0_35 = arith.constant 0 : index
    %c112_36 = arith.constant 112 : index
    %288 = vector.load %arg7[%c0_35, %c112_36] : memref<4x512xf32, #tpu.memory_space<vmem>>, vector<4x256xf32>
    %289 = vector.extract_strided_slice %258 {offsets = [0, 4], sizes = [4, 1], strides = [1, 1]} : vector<4x36xf32> to vector<4x1xf32>
    %290 = vector.extract_strided_slice %288 {offsets = [0, 0], sizes = [1, 256], strides = [1, 1]} : vector<4x256xf32> to vector<1x256xf32>
    %291 = vector.broadcast %289 : vector<4x1xf32> to vector<4x256xf32>
    %292 = vector.broadcast %290 : vector<1x256xf32> to vector<4x256xf32>
    %293 = arith.mulf %291, %292 : vector<4x256xf32>
    %294 = arith.addf %287, %293 : vector<4x256xf32>
    %295 = vector.extract_strided_slice %258 {offsets = [0, 5], sizes = [4, 1], strides = [1, 1]} : vector<4x36xf32> to vector<4x1xf32>
    %296 = vector.extract_strided_slice %288 {offsets = [1, 0], sizes = [1, 256], strides = [1, 1]} : vector<4x256xf32> to vector<1x256xf32>
    %297 = vector.broadcast %295 : vector<4x1xf32> to vector<4x256xf32>
    %298 = vector.broadcast %296 : vector<1x256xf32> to vector<4x256xf32>
    %299 = arith.mulf %297, %298 : vector<4x256xf32>
    %300 = arith.addf %294, %299 : vector<4x256xf32>
    %301 = vector.extract_strided_slice %258 {offsets = [0, 6], sizes = [4, 1], strides = [1, 1]} : vector<4x36xf32> to vector<4x1xf32>
    %302 = vector.extract_strided_slice %288 {offsets = [2, 0], sizes = [1, 256], strides = [1, 1]} : vector<4x256xf32> to vector<1x256xf32>
    %303 = vector.broadcast %301 : vector<4x1xf32> to vector<4x256xf32>
    %304 = vector.broadcast %302 : vector<1x256xf32> to vector<4x256xf32>
    %305 = arith.mulf %303, %304 : vector<4x256xf32>
    %306 = arith.addf %300, %305 : vector<4x256xf32>
    %307 = vector.extract_strided_slice %258 {offsets = [0, 7], sizes = [4, 1], strides = [1, 1]} : vector<4x36xf32> to vector<4x1xf32>
    %308 = vector.extract_strided_slice %288 {offsets = [3, 0], sizes = [1, 256], strides = [1, 1]} : vector<4x256xf32> to vector<1x256xf32>
    %309 = vector.broadcast %307 : vector<4x1xf32> to vector<4x256xf32>
    %310 = vector.broadcast %308 : vector<1x256xf32> to vector<4x256xf32>
    %311 = arith.mulf %309, %310 : vector<4x256xf32>
    %312 = arith.addf %306, %311 : vector<4x256xf32>
    %c0_37 = arith.constant 0 : index
    %c113_38 = arith.constant 113 : index
    %313 = vector.load %arg7[%c0_37, %c113_38] : memref<4x512xf32, #tpu.memory_space<vmem>>, vector<4x256xf32>
    %314 = vector.extract_strided_slice %0 {offsets = [1, 0], sizes = [1, 256], strides = [1, 1]} : vector<2x256xf32> to vector<1x256xf32>
    %315 = vector.broadcast %314 : vector<1x256xf32> to vector<4x256xf32>
    %316 = arith.mulf %313, %315 : vector<4x256xf32>
    %317 = vector.extract_strided_slice %258 {offsets = [0, 8], sizes = [4, 1], strides = [1, 1]} : vector<4x36xf32> to vector<4x1xf32>
    %318 = vector.extract_strided_slice %316 {offsets = [0, 0], sizes = [1, 256], strides = [1, 1]} : vector<4x256xf32> to vector<1x256xf32>
    %319 = vector.broadcast %317 : vector<4x1xf32> to vector<4x256xf32>
    %320 = vector.broadcast %318 : vector<1x256xf32> to vector<4x256xf32>
    %321 = arith.mulf %319, %320 : vector<4x256xf32>
    %322 = arith.addf %312, %321 : vector<4x256xf32>
    %323 = vector.extract_strided_slice %258 {offsets = [0, 9], sizes = [4, 1], strides = [1, 1]} : vector<4x36xf32> to vector<4x1xf32>
    %324 = vector.extract_strided_slice %316 {offsets = [1, 0], sizes = [1, 256], strides = [1, 1]} : vector<4x256xf32> to vector<1x256xf32>
    %325 = vector.broadcast %323 : vector<4x1xf32> to vector<4x256xf32>
    %326 = vector.broadcast %324 : vector<1x256xf32> to vector<4x256xf32>
    %327 = arith.mulf %325, %326 : vector<4x256xf32>
    %328 = arith.addf %322, %327 : vector<4x256xf32>
    %329 = vector.extract_strided_slice %258 {offsets = [0, 10], sizes = [4, 1], strides = [1, 1]} : vector<4x36xf32> to vector<4x1xf32>
    %330 = vector.extract_strided_slice %316 {offsets = [2, 0], sizes = [1, 256], strides = [1, 1]} : vector<4x256xf32> to vector<1x256xf32>
    %331 = vector.broadcast %329 : vector<4x1xf32> to vector<4x256xf32>
    %332 = vector.broadcast %330 : vector<1x256xf32> to vector<4x256xf32>
    %333 = arith.mulf %331, %332 : vector<4x256xf32>
    %334 = arith.addf %328, %333 : vector<4x256xf32>
    %335 = vector.extract_strided_slice %258 {offsets = [0, 11], sizes = [4, 1], strides = [1, 1]} : vector<4x36xf32> to vector<4x1xf32>
    %336 = vector.extract_strided_slice %316 {offsets = [3, 0], sizes = [1, 256], strides = [1, 1]} : vector<4x256xf32> to vector<1x256xf32>
    %337 = vector.broadcast %335 : vector<4x1xf32> to vector<4x256xf32>
    %338 = vector.broadcast %336 : vector<1x256xf32> to vector<4x256xf32>
    %339 = arith.mulf %337, %338 : vector<4x256xf32>
    %340 = arith.addf %334, %339 : vector<4x256xf32>
    %c0_39 = arith.constant 0 : index
    %c127_40 = arith.constant 127 : index
    %341 = vector.load %arg7[%c0_39, %c127_40] : memref<4x512xf32, #tpu.memory_space<vmem>>, vector<4x256xf32>
    %342 = vector.extract_strided_slice %0 {offsets = [0, 0], sizes = [1, 256], strides = [1, 1]} : vector<2x256xf32> to vector<1x256xf32>
    %343 = vector.broadcast %342 : vector<1x256xf32> to vector<4x256xf32>
    %344 = arith.mulf %341, %343 : vector<4x256xf32>
    %345 = vector.extract_strided_slice %258 {offsets = [0, 12], sizes = [4, 1], strides = [1, 1]} : vector<4x36xf32> to vector<4x1xf32>
    %346 = vector.extract_strided_slice %344 {offsets = [0, 0], sizes = [1, 256], strides = [1, 1]} : vector<4x256xf32> to vector<1x256xf32>
    %347 = vector.broadcast %345 : vector<4x1xf32> to vector<4x256xf32>
    %348 = vector.broadcast %346 : vector<1x256xf32> to vector<4x256xf32>
    %349 = arith.mulf %347, %348 : vector<4x256xf32>
    %350 = arith.addf %340, %349 : vector<4x256xf32>
    %351 = vector.extract_strided_slice %258 {offsets = [0, 13], sizes = [4, 1], strides = [1, 1]} : vector<4x36xf32> to vector<4x1xf32>
    %352 = vector.extract_strided_slice %344 {offsets = [1, 0], sizes = [1, 256], strides = [1, 1]} : vector<4x256xf32> to vector<1x256xf32>
    %353 = vector.broadcast %351 : vector<4x1xf32> to vector<4x256xf32>
    %354 = vector.broadcast %352 : vector<1x256xf32> to vector<4x256xf32>
    %355 = arith.mulf %353, %354 : vector<4x256xf32>
    %356 = arith.addf %350, %355 : vector<4x256xf32>
    %357 = vector.extract_strided_slice %258 {offsets = [0, 14], sizes = [4, 1], strides = [1, 1]} : vector<4x36xf32> to vector<4x1xf32>
    %358 = vector.extract_strided_slice %344 {offsets = [2, 0], sizes = [1, 256], strides = [1, 1]} : vector<4x256xf32> to vector<1x256xf32>
    %359 = vector.broadcast %357 : vector<4x1xf32> to vector<4x256xf32>
    %360 = vector.broadcast %358 : vector<1x256xf32> to vector<4x256xf32>
    %361 = arith.mulf %359, %360 : vector<4x256xf32>
    %362 = arith.addf %356, %361 : vector<4x256xf32>
    %363 = vector.extract_strided_slice %258 {offsets = [0, 15], sizes = [4, 1], strides = [1, 1]} : vector<4x36xf32> to vector<4x1xf32>
    %364 = vector.extract_strided_slice %344 {offsets = [3, 0], sizes = [1, 256], strides = [1, 1]} : vector<4x256xf32> to vector<1x256xf32>
    %365 = vector.broadcast %363 : vector<4x1xf32> to vector<4x256xf32>
    %366 = vector.broadcast %364 : vector<1x256xf32> to vector<4x256xf32>
    %367 = arith.mulf %365, %366 : vector<4x256xf32>
    %368 = arith.addf %362, %367 : vector<4x256xf32>
    %c0_41 = arith.constant 0 : index
    %c128_42 = arith.constant 128 : index
    %369 = vector.load %arg7[%c0_41, %c128_42] : memref<4x512xf32, #tpu.memory_space<vmem>>, vector<4x256xf32>
    %370 = vector.extract_strided_slice %258 {offsets = [0, 16], sizes = [4, 1], strides = [1, 1]} : vector<4x36xf32> to vector<4x1xf32>
    %371 = vector.extract_strided_slice %369 {offsets = [0, 0], sizes = [1, 256], strides = [1, 1]} : vector<4x256xf32> to vector<1x256xf32>
    %372 = vector.broadcast %370 : vector<4x1xf32> to vector<4x256xf32>
    %373 = vector.broadcast %371 : vector<1x256xf32> to vector<4x256xf32>
    %374 = arith.mulf %372, %373 : vector<4x256xf32>
    %375 = arith.addf %368, %374 : vector<4x256xf32>
    %376 = vector.extract_strided_slice %258 {offsets = [0, 17], sizes = [4, 1], strides = [1, 1]} : vector<4x36xf32> to vector<4x1xf32>
    %377 = vector.extract_strided_slice %369 {offsets = [1, 0], sizes = [1, 256], strides = [1, 1]} : vector<4x256xf32> to vector<1x256xf32>
    %378 = vector.broadcast %376 : vector<4x1xf32> to vector<4x256xf32>
    %379 = vector.broadcast %377 : vector<1x256xf32> to vector<4x256xf32>
    %380 = arith.mulf %378, %379 : vector<4x256xf32>
    %381 = arith.addf %375, %380 : vector<4x256xf32>
    %382 = vector.extract_strided_slice %258 {offsets = [0, 18], sizes = [4, 1], strides = [1, 1]} : vector<4x36xf32> to vector<4x1xf32>
    %383 = vector.extract_strided_slice %369 {offsets = [2, 0], sizes = [1, 256], strides = [1, 1]} : vector<4x256xf32> to vector<1x256xf32>
    %384 = vector.broadcast %382 : vector<4x1xf32> to vector<4x256xf32>
    %385 = vector.broadcast %383 : vector<1x256xf32> to vector<4x256xf32>
    %386 = arith.mulf %384, %385 : vector<4x256xf32>
    %387 = arith.addf %381, %386 : vector<4x256xf32>
    %388 = vector.extract_strided_slice %258 {offsets = [0, 19], sizes = [4, 1], strides = [1, 1]} : vector<4x36xf32> to vector<4x1xf32>
    %389 = vector.extract_strided_slice %369 {offsets = [3, 0], sizes = [1, 256], strides = [1, 1]} : vector<4x256xf32> to vector<1x256xf32>
    %390 = vector.broadcast %388 : vector<4x1xf32> to vector<4x256xf32>
    %391 = vector.broadcast %389 : vector<1x256xf32> to vector<4x256xf32>
    %392 = arith.mulf %390, %391 : vector<4x256xf32>
    %393 = arith.addf %387, %392 : vector<4x256xf32>
    %c0_43 = arith.constant 0 : index
    %c129_44 = arith.constant 129 : index
    %394 = vector.load %arg7[%c0_43, %c129_44] : memref<4x512xf32, #tpu.memory_space<vmem>>, vector<4x256xf32>
    %395 = vector.extract_strided_slice %0 {offsets = [1, 0], sizes = [1, 256], strides = [1, 1]} : vector<2x256xf32> to vector<1x256xf32>
    %396 = vector.broadcast %395 : vector<1x256xf32> to vector<4x256xf32>
    %397 = arith.mulf %394, %396 : vector<4x256xf32>
    %398 = vector.extract_strided_slice %258 {offsets = [0, 20], sizes = [4, 1], strides = [1, 1]} : vector<4x36xf32> to vector<4x1xf32>
    %399 = vector.extract_strided_slice %397 {offsets = [0, 0], sizes = [1, 256], strides = [1, 1]} : vector<4x256xf32> to vector<1x256xf32>
    %400 = vector.broadcast %398 : vector<4x1xf32> to vector<4x256xf32>
    %401 = vector.broadcast %399 : vector<1x256xf32> to vector<4x256xf32>
    %402 = arith.mulf %400, %401 : vector<4x256xf32>
    %403 = arith.addf %393, %402 : vector<4x256xf32>
    %404 = vector.extract_strided_slice %258 {offsets = [0, 21], sizes = [4, 1], strides = [1, 1]} : vector<4x36xf32> to vector<4x1xf32>
    %405 = vector.extract_strided_slice %397 {offsets = [1, 0], sizes = [1, 256], strides = [1, 1]} : vector<4x256xf32> to vector<1x256xf32>
    %406 = vector.broadcast %404 : vector<4x1xf32> to vector<4x256xf32>
    %407 = vector.broadcast %405 : vector<1x256xf32> to vector<4x256xf32>
    %408 = arith.mulf %406, %407 : vector<4x256xf32>
    %409 = arith.addf %403, %408 : vector<4x256xf32>
    %410 = vector.extract_strided_slice %258 {offsets = [0, 22], sizes = [4, 1], strides = [1, 1]} : vector<4x36xf32> to vector<4x1xf32>
    %411 = vector.extract_strided_slice %397 {offsets = [2, 0], sizes = [1, 256], strides = [1, 1]} : vector<4x256xf32> to vector<1x256xf32>
    %412 = vector.broadcast %410 : vector<4x1xf32> to vector<4x256xf32>
    %413 = vector.broadcast %411 : vector<1x256xf32> to vector<4x256xf32>
    %414 = arith.mulf %412, %413 : vector<4x256xf32>
    %415 = arith.addf %409, %414 : vector<4x256xf32>
    %416 = vector.extract_strided_slice %258 {offsets = [0, 23], sizes = [4, 1], strides = [1, 1]} : vector<4x36xf32> to vector<4x1xf32>
    %417 = vector.extract_strided_slice %397 {offsets = [3, 0], sizes = [1, 256], strides = [1, 1]} : vector<4x256xf32> to vector<1x256xf32>
    %418 = vector.broadcast %416 : vector<4x1xf32> to vector<4x256xf32>
    %419 = vector.broadcast %417 : vector<1x256xf32> to vector<4x256xf32>
    %420 = arith.mulf %418, %419 : vector<4x256xf32>
    %421 = arith.addf %415, %420 : vector<4x256xf32>
    %c0_45 = arith.constant 0 : index
    %c143_46 = arith.constant 143 : index
    %422 = vector.load %arg7[%c0_45, %c143_46] : memref<4x512xf32, #tpu.memory_space<vmem>>, vector<4x256xf32>
    %423 = vector.extract_strided_slice %0 {offsets = [0, 0], sizes = [1, 256], strides = [1, 1]} : vector<2x256xf32> to vector<1x256xf32>
    %424 = vector.broadcast %423 : vector<1x256xf32> to vector<4x256xf32>
    %425 = arith.mulf %422, %424 : vector<4x256xf32>
    %426 = vector.extract_strided_slice %258 {offsets = [0, 24], sizes = [4, 1], strides = [1, 1]} : vector<4x36xf32> to vector<4x1xf32>
    %427 = vector.extract_strided_slice %425 {offsets = [0, 0], sizes = [1, 256], strides = [1, 1]} : vector<4x256xf32> to vector<1x256xf32>
    %428 = vector.broadcast %426 : vector<4x1xf32> to vector<4x256xf32>
    %429 = vector.broadcast %427 : vector<1x256xf32> to vector<4x256xf32>
    %430 = arith.mulf %428, %429 : vector<4x256xf32>
    %431 = arith.addf %421, %430 : vector<4x256xf32>
    %432 = vector.extract_strided_slice %258 {offsets = [0, 25], sizes = [4, 1], strides = [1, 1]} : vector<4x36xf32> to vector<4x1xf32>
    %433 = vector.extract_strided_slice %425 {offsets = [1, 0], sizes = [1, 256], strides = [1, 1]} : vector<4x256xf32> to vector<1x256xf32>
    %434 = vector.broadcast %432 : vector<4x1xf32> to vector<4x256xf32>
    %435 = vector.broadcast %433 : vector<1x256xf32> to vector<4x256xf32>
    %436 = arith.mulf %434, %435 : vector<4x256xf32>
    %437 = arith.addf %431, %436 : vector<4x256xf32>
    %438 = vector.extract_strided_slice %258 {offsets = [0, 26], sizes = [4, 1], strides = [1, 1]} : vector<4x36xf32> to vector<4x1xf32>
    %439 = vector.extract_strided_slice %425 {offsets = [2, 0], sizes = [1, 256], strides = [1, 1]} : vector<4x256xf32> to vector<1x256xf32>
    %440 = vector.broadcast %438 : vector<4x1xf32> to vector<4x256xf32>
    %441 = vector.broadcast %439 : vector<1x256xf32> to vector<4x256xf32>
    %442 = arith.mulf %440, %441 : vector<4x256xf32>
    %443 = arith.addf %437, %442 : vector<4x256xf32>
    %444 = vector.extract_strided_slice %258 {offsets = [0, 27], sizes = [4, 1], strides = [1, 1]} : vector<4x36xf32> to vector<4x1xf32>
    %445 = vector.extract_strided_slice %425 {offsets = [3, 0], sizes = [1, 256], strides = [1, 1]} : vector<4x256xf32> to vector<1x256xf32>
    %446 = vector.broadcast %444 : vector<4x1xf32> to vector<4x256xf32>
    %447 = vector.broadcast %445 : vector<1x256xf32> to vector<4x256xf32>
    %448 = arith.mulf %446, %447 : vector<4x256xf32>
    %449 = arith.addf %443, %448 : vector<4x256xf32>
    %c0_47 = arith.constant 0 : index
    %c144_48 = arith.constant 144 : index
    %450 = vector.load %arg7[%c0_47, %c144_48] : memref<4x512xf32, #tpu.memory_space<vmem>>, vector<4x256xf32>
    %451 = vector.extract_strided_slice %258 {offsets = [0, 28], sizes = [4, 1], strides = [1, 1]} : vector<4x36xf32> to vector<4x1xf32>
    %452 = vector.extract_strided_slice %450 {offsets = [0, 0], sizes = [1, 256], strides = [1, 1]} : vector<4x256xf32> to vector<1x256xf32>
    %453 = vector.broadcast %451 : vector<4x1xf32> to vector<4x256xf32>
    %454 = vector.broadcast %452 : vector<1x256xf32> to vector<4x256xf32>
    %455 = arith.mulf %453, %454 : vector<4x256xf32>
    %456 = arith.addf %449, %455 : vector<4x256xf32>
    %457 = vector.extract_strided_slice %258 {offsets = [0, 29], sizes = [4, 1], strides = [1, 1]} : vector<4x36xf32> to vector<4x1xf32>
    %458 = vector.extract_strided_slice %450 {offsets = [1, 0], sizes = [1, 256], strides = [1, 1]} : vector<4x256xf32> to vector<1x256xf32>
    %459 = vector.broadcast %457 : vector<4x1xf32> to vector<4x256xf32>
    %460 = vector.broadcast %458 : vector<1x256xf32> to vector<4x256xf32>
    %461 = arith.mulf %459, %460 : vector<4x256xf32>
    %462 = arith.addf %456, %461 : vector<4x256xf32>
    %463 = vector.extract_strided_slice %258 {offsets = [0, 30], sizes = [4, 1], strides = [1, 1]} : vector<4x36xf32> to vector<4x1xf32>
    %464 = vector.extract_strided_slice %450 {offsets = [2, 0], sizes = [1, 256], strides = [1, 1]} : vector<4x256xf32> to vector<1x256xf32>
    %465 = vector.broadcast %463 : vector<4x1xf32> to vector<4x256xf32>
    %466 = vector.broadcast %464 : vector<1x256xf32> to vector<4x256xf32>
    %467 = arith.mulf %465, %466 : vector<4x256xf32>
    %468 = arith.addf %462, %467 : vector<4x256xf32>
    %469 = vector.extract_strided_slice %258 {offsets = [0, 31], sizes = [4, 1], strides = [1, 1]} : vector<4x36xf32> to vector<4x1xf32>
    %470 = vector.extract_strided_slice %450 {offsets = [3, 0], sizes = [1, 256], strides = [1, 1]} : vector<4x256xf32> to vector<1x256xf32>
    %471 = vector.broadcast %469 : vector<4x1xf32> to vector<4x256xf32>
    %472 = vector.broadcast %470 : vector<1x256xf32> to vector<4x256xf32>
    %473 = arith.mulf %471, %472 : vector<4x256xf32>
    %474 = arith.addf %468, %473 : vector<4x256xf32>
    %c0_49 = arith.constant 0 : index
    %c145_50 = arith.constant 145 : index
    %475 = vector.load %arg7[%c0_49, %c145_50] : memref<4x512xf32, #tpu.memory_space<vmem>>, vector<4x256xf32>
    %476 = vector.extract_strided_slice %0 {offsets = [1, 0], sizes = [1, 256], strides = [1, 1]} : vector<2x256xf32> to vector<1x256xf32>
    %477 = vector.broadcast %476 : vector<1x256xf32> to vector<4x256xf32>
    %478 = arith.mulf %475, %477 : vector<4x256xf32>
    %479 = vector.extract_strided_slice %258 {offsets = [0, 32], sizes = [4, 1], strides = [1, 1]} : vector<4x36xf32> to vector<4x1xf32>
    %480 = vector.extract_strided_slice %478 {offsets = [0, 0], sizes = [1, 256], strides = [1, 1]} : vector<4x256xf32> to vector<1x256xf32>
    %481 = vector.broadcast %479 : vector<4x1xf32> to vector<4x256xf32>
    %482 = vector.broadcast %480 : vector<1x256xf32> to vector<4x256xf32>
    %483 = arith.mulf %481, %482 : vector<4x256xf32>
    %484 = arith.addf %474, %483 : vector<4x256xf32>
    %485 = vector.extract_strided_slice %258 {offsets = [0, 33], sizes = [4, 1], strides = [1, 1]} : vector<4x36xf32> to vector<4x1xf32>
    %486 = vector.extract_strided_slice %478 {offsets = [1, 0], sizes = [1, 256], strides = [1, 1]} : vector<4x256xf32> to vector<1x256xf32>
    %487 = vector.broadcast %485 : vector<4x1xf32> to vector<4x256xf32>
    %488 = vector.broadcast %486 : vector<1x256xf32> to vector<4x256xf32>
    %489 = arith.mulf %487, %488 : vector<4x256xf32>
    %490 = arith.addf %484, %489 : vector<4x256xf32>
    %491 = vector.extract_strided_slice %258 {offsets = [0, 34], sizes = [4, 1], strides = [1, 1]} : vector<4x36xf32> to vector<4x1xf32>
    %492 = vector.extract_strided_slice %478 {offsets = [2, 0], sizes = [1, 256], strides = [1, 1]} : vector<4x256xf32> to vector<1x256xf32>
    %493 = vector.broadcast %491 : vector<4x1xf32> to vector<4x256xf32>
    %494 = vector.broadcast %492 : vector<1x256xf32> to vector<4x256xf32>
    %495 = arith.mulf %493, %494 : vector<4x256xf32>
    %496 = arith.addf %490, %495 : vector<4x256xf32>
    %497 = vector.extract_strided_slice %258 {offsets = [0, 35], sizes = [4, 1], strides = [1, 1]} : vector<4x36xf32> to vector<4x1xf32>
    %498 = vector.extract_strided_slice %478 {offsets = [3, 0], sizes = [1, 256], strides = [1, 1]} : vector<4x256xf32> to vector<1x256xf32>
    %499 = vector.broadcast %497 : vector<4x1xf32> to vector<4x256xf32>
    %500 = vector.broadcast %498 : vector<1x256xf32> to vector<4x256xf32>
    %501 = arith.mulf %499, %500 : vector<4x256xf32>
    %502 = arith.addf %496, %501 : vector<4x256xf32>
    %c0_51 = arith.constant 0 : index
    %c0_52 = arith.constant 0 : index
    %c0_53 = arith.constant 0 : index
    %503 = vector.load %arg5[%c0_51, %c0_52, %c0_53] : memref<1x4x256xf32, #tpu.memory_space<vmem>>, vector<1x4x256xf32>
    %504 = vector.shape_cast %503 : vector<1x4x256xf32> to vector<4x256xf32>
    %505 = vector.shape_cast %502 : vector<4x256xf32> to vector<1x4x256xf32>
    tpu.vector_store %arg5[%c0_51, %c0_52, %c0_53], %505 {strides = array<i32>} : memref<1x4x256xf32, #tpu.memory_space<vmem>>, vector<1x4x256xf32>,
    return
  }
  func.func @transform_0(%arg0: i32) -> (i32, i32, i32) {
    %c0_i32 = arith.constant 0 : i32
    %c0_i32_0 = arith.constant 0 : i32
    %c0_i32_1 = arith.constant 0 : i32
    return %arg0, %c0_i32, %c0_i32_0 : i32, i32, i32
  }
  func.func @transform_1(%arg0: i32) -> (i32, i32) {
    %c0_i32 = arith.constant 0 : i32
    %c0_i32_0 = arith.constant 0 : i32
    %c0_i32_1 = arith.constant 0 : i32
    return %c0_i32, %c0_i32_0 : i32, i32
  }
  func.func @transform_2(%arg0: i32) -> (i32, i32) {
    %c0_i32 = arith.constant 0 : i32
    %c0_i32_0 = arith.constant 0 : i32
    %c0_i32_1 = arith.constant 0 : i32
    return %c0_i32, %c0_i32_0 : i32, i32
  }
  func.func @transform_3(%arg0: i32) -> (i32, i32) {
    %c0_i32 = arith.constant 0 : i32
    %c0_i32_0 = arith.constant 0 : i32
    %c0_i32_1 = arith.constant 0 : i32
    return %c0_i32, %c0_i32_0 : i32, i32
  }
  func.func @transform_4(%arg0: i32) -> (i32, i32, i32) {
    %c0_i32 = arith.constant 0 : i32
    %c0_i32_0 = arith.constant 0 : i32
    %c0_i32_1 = arith.constant 0 : i32
    return %arg0, %c0_i32, %c0_i32_0 : i32, i32, i32
  }
}

</mosaic_0001>

<llo_original>
// kernel: nopa_conv_forward.1
$region0: #{nopa_conv_forward.1}
  #allocation0 [shape = 'u32[]', space=smem, size = 0x4, offset = 0x4, fixed_abs, tag = 'smem constant byte address 0x4 - core index']
  #allocation1 [shape = 'u32[72,128]{1,0:T(1,128)}', space=vmem, size = 0x9000, scoped, tag = 'internal scratch']
  #allocation2 [shape = 'f32[4,512]{1,0:T(4,128)}', space=vmem, size = 0x2000, scoped, tag = 'scratch operand']
  #allocation3 [shape = 'f32[4,512]{1,0:T(4,128)}', space=vmem, size = 0x2000, scoped, tag = 'scratch operand']
  %s0 = inlined_call_operand.vmem [shape: f32[2,4,256], index: 0, kind: input, shape index: {}]
  %s1 = inlined_call_operand.vmem [shape: f32[4,36], index: 1, kind: input, shape index: {}]
  %s2 = inlined_call_operand.vmem [shape: f32[4,36], index: 2, kind: input, shape index: {}]
  %s3 = inlined_call_operand.vmem [shape: f32[2,256], index: 3, kind: input, shape index: {}]
  %s4 = inlined_call_operand.vmem [shape: f32[2,4,256], index: 4, kind: output, shape index: {}]
  %s5 = sld [smem:[#allocation0]]
  $region49: #{nopa_conv_forward.1} parent=0
    _
  %s7 = ssub.s32 1, %s5
  %s8 = scalar_select 0, %s7, %s5
  loop: start=0, step=1, limit=4
  $region2: #{nopa_conv_forward.1} parent=0 // loop_pre_header
    _
  $region3: #{nopa_conv_forward.1} parent=0 // loop_header
    %s10 = sphi 0, %s14
    %p11 = scmp.ge.s32.totalorder %s10, 4
    %s20 = sphi 0, %s22
    %s23 = sphi 0, %s20
    %s24 = sphi 0, %s23
    %s40 = sphi 0, %s24
    %s44 = sphi 0, %s44
    %s46 = sphi 0, %s44
    %s47 = sphi 0, %s46
    %s61 = sphi 0, %s47
    %s65 = sphi 0, %s65
    %s67 = sphi 0, %s65
    %s68 = sphi 0, %s67
    %s82 = sphi 0, %s68
    %s86 = sphi 0, %s86
    %s88 = sphi 0, %s86
    %s89 = sphi 0, %s88
    %s103 = sphi 0, %s89
    %s109 = sphi 0, %s111
    %s112 = sphi 0, %s109
    %s113 = sphi 0, %s112
    %s129 = sphi 0, %s113
  $region4: #{nopa_conv_forward.1} parent=0 // loop_header_branch
    %13 = sbr.rel (%p11) target = $region8
  $region5: #{nopa_conv_forward.1} parent=0 // loop_body
    %s15 = ssub.s32 %s10, 1
    %s16 = ssub.s32 %s10, 2
    %s17 = sadd.s32 %s10, 1
    %s18 = ssub.s32 %s10, %s17
    %p19 = scmp.eq.s32.totalorder %s18, 0
    %s21 = sadd.s32 %s20, 1
    %s22 = scalar_select %p19, %s20, %s21
    %p25 = pneg %p19
    %p26 = scmp.eq.s32.totalorder %s10, 1
    %p27 = por %p25, %p26
    %p28 = scmp.ne.s32.totalorder %s20, %s23
    %p29 = scmp.eq.s32.totalorder %s10, 0
    %p30 = por %p28, %p29
    %p31 = scmp.ne.s32.totalorder %s20, %s23
    %p32 = scmp.eq.s32.totalorder %s15, 1
    %p33 = por %p31, %p32
    %p34 = scmp.ne.s32.totalorder %s23, %s24
    %p35 = scmp.eq.s32.totalorder %s15, 0
    %p36 = por %p34, %p35
    %p37 = scmp.ne.s32.totalorder %s23, %s24
    %p38 = scmp.eq.s32.totalorder %s16, 1
    %p39 = por %p37, %p38
    %p41 = scmp.ne.s32.totalorder %s24, %s40
    %p42 = scmp.eq.s32.totalorder %s16, 0
    %p43 = por %p41, %p42
    %s45 = sadd.s32 %s44, 1
    %p48 = scmp.eq.s32.totalorder %s10, 1
    %p49 = scmp.ne.s32.totalorder %s44, %s46
    %p50 = scmp.eq.s32.totalorder %s10, 0
    %p51 = por %p49, %p50
    %p52 = scmp.ne.s32.totalorder %s44, %s46
    %p53 = scmp.eq.s32.totalorder %s15, 1
    %p54 = por %p52, %p53
    %p55 = scmp.ne.s32.totalorder %s46, %s47
    %p56 = scmp.eq.s32.totalorder %s15, 0
    %p57 = por %p55, %p56
    %p58 = scmp.ne.s32.totalorder %s46, %s47
    %p59 = scmp.eq.s32.totalorder %s16, 1
    %p60 = por %p58, %p59
    %p62 = scmp.ne.s32.totalorder %s47, %s61
    %p63 = scmp.eq.s32.totalorder %s16, 0
    %p64 = por %p62, %p63
    %s66 = sadd.s32 %s65, 1
    %p69 = scmp.eq.s32.totalorder %s10, 1
    %p70 = scmp.ne.s32.totalorder %s65, %s67
    %p71 = scmp.eq.s32.totalorder %s10, 0
    %p72 = por %p70, %p71
    %p73 = scmp.ne.s32.totalorder %s65, %s67
    %p74 = scmp.eq.s32.totalorder %s15, 1
    %p75 = por %p73, %p74
    %p76 = scmp.ne.s32.totalorder %s67, %s68
    %p77 = scmp.eq.s32.totalorder %s15, 0
    %p78 = por %p76, %p77
    %p79 = scmp.ne.s32.totalorder %s67, %s68
    %p80 = scmp.eq.s32.totalorder %s16, 1
    %p81 = por %p79, %p80
    %p83 = scmp.ne.s32.totalorder %s68, %s82
    %p84 = scmp.eq.s32.totalorder %s16, 0
    %p85 = por %p83, %p84
    %s87 = sadd.s32 %s86, 1
    %p90 = scmp.eq.s32.totalorder %s10, 1
    %p91 = scmp.ne.s32.totalorder %s86, %s88
    %p92 = scmp.eq.s32.totalorder %s10, 0
    %p93 = por %p91, %p92
    %p94 = scmp.ne.s32.totalorder %s86, %s88
    %p95 = scmp.eq.s32.totalorder %s15, 1
    %p96 = por %p94, %p95
    %p97 = scmp.ne.s32.totalorder %s88, %s89
    %p98 = scmp.eq.s32.totalorder %s15, 0
    %p99 = por %p97, %p98
    %p100 = scmp.ne.s32.totalorder %s88, %s89
    %p101 = scmp.eq.s32.totalorder %s16, 1
    %p102 = por %p100, %p101
    %p104 = scmp.ne.s32.totalorder %s89, %s103
    %p105 = scmp.eq.s32.totalorder %s16, 0
    %p106 = por %p104, %p105
    %s107 = ssub.s32 %s10, %s17
    %p108 = scmp.eq.s32.totalorder %s107, 0
    %s110 = sadd.s32 %s109, 1
    %s111 = scalar_select %p108, %s109, %s110
    %p114 = pneg %p108
    %p115 = scmp.eq.s32.totalorder %s10, 1
    %p116 = por %p114, %p115
    %p117 = scmp.ne.s32.totalorder %s109, %s112
    %p118 = scmp.eq.s32.totalorder %s10, 0
    %p119 = por %p117, %p118
    %p120 = scmp.ne.s32.totalorder %s109, %s112
    %p121 = scmp.eq.s32.totalorder %s15, 1
    %p122 = por %p120, %p121
    %p123 = scmp.ne.s32.totalorder %s112, %s113
    %p124 = scmp.eq.s32.totalorder %s15, 0
    %p125 = por %p123, %p124
    %p126 = scmp.ne.s32.totalorder %s112, %s113
    %p127 = scmp.eq.s32.totalorder %s16, 1
    %p128 = por %p126, %p127
    %p130 = scmp.ne.s32.totalorder %s113, %s129
    %p131 = scmp.eq.s32.totalorder %s16, 0
    %p132 = por %p130, %p131
    %p133 = scmp.le.s32.totalorder 1, %s10
    %p134 = scmp.lt.s32.totalorder %s10, 3
    %p135 = pnand %p133, %p134
    %p136 = pneg %p135
    // Predicated region
    $region9: #{nopa_conv_forward.1} parent=5 // pred_check
      _
    $region10: #{nopa_conv_forward.1} parent=5 // pred_check_branch
      %138 = sbr.rel (%p135) target = $region12
    $region11: #{nopa_conv_forward.1} parent=5 // pred_region
      %s139 = ssub.s32 %s10, 1
      // Predicated region
      $region13: #{nopa_conv_forward.1} parent=11 // pred_check
        %p140 = pneg %p57
      $region14: #{nopa_conv_forward.1} parent=11 // pred_check_branch
        %142 = sbr.rel (%p140) target = $region16
      $region15: #{nopa_conv_forward.1} parent=11 // pred_region
        _
      $region16: #{nopa_conv_forward.1} parent=11 // pred_fallthru
        _
      // Predicated region
      $region17: #{nopa_conv_forward.1} parent=11 // pred_check
        %p143 = pneg %p78
      $region18: #{nopa_conv_forward.1} parent=11 // pred_check_branch
        %145 = sbr.rel (%p143) target = $region20
      $region19: #{nopa_conv_forward.1} parent=11 // pred_region
        _
      $region20: #{nopa_conv_forward.1} parent=11 // pred_fallthru
        _
      // Predicated region
      $region21: #{nopa_conv_forward.1} parent=11 // pred_check
        %p146 = pneg %p99
      $region22: #{nopa_conv_forward.1} parent=11 // pred_check_branch
        %148 = sbr.rel (%p146) target = $region24
      $region23: #{nopa_conv_forward.1} parent=11 // pred_region
        _
      $region24: #{nopa_conv_forward.1} parent=11 // pred_fallthru
        _
    $region12: #{nopa_conv_forward.1} parent=5 // pred_fallthru
      _
    %p149 = scmp.lt.s32.totalorder %s10, 2
    // Predicated region
    $region25: #{nopa_conv_forward.1} parent=5 // pred_check
      %p150 = pneg %p149
    $region26: #{nopa_conv_forward.1} parent=5 // pred_check_branch
      %152 = sbr.rel (%p150) target = $region28
    $region27: #{nopa_conv_forward.1} parent=5 // pred_region
      // Predicated region
      $region29: #{nopa_conv_forward.1} parent=27 // pred_check
        %p153 = pneg %p30
      $region30: #{nopa_conv_forward.1} parent=27 // pred_check_branch
        %155 = sbr.rel (%p153) target = $region32
      $region31: #{nopa_conv_forward.1} parent=27 // pred_region
        %p156 = scmp.lt.s32.totalorder %s10, 1
        %s157 = scalar_select %p156, %s10, 1
        %s158 = smul.addr %s157, 2
        %s159 = smul.addr %s158, 4
        %s160 = scalar_lea.vmem %s0, %s159
      $region32: #{nopa_conv_forward.1} parent=27 // pred_fallthru
        _
    $region28: #{nopa_conv_forward.1} parent=5 // pred_fallthru
      _
    %p161 = scmp.le.s32.totalorder 1, %s10
    %p162 = scmp.lt.s32.totalorder %s10, 3
    %p163 = pnand %p161, %p162
    %p164 = pneg %p163
    // Predicated region
    $region33: #{nopa_conv_forward.1} parent=5 // pred_check
      _
    $region34: #{nopa_conv_forward.1} parent=5 // pred_check_branch
      %166 = sbr.rel (%p163) target = $region36
    $region35: #{nopa_conv_forward.1} parent=5 // pred_region
      %s167 = ssub.s32 %s10, 1
      %p168 = scmp.lt.s32.totalorder %s15, 1
      %s169 = scalar_select %p168, %s15, 1
      %s170 = smul.addr %s169, 2
      %s171 = smul.addr %s170, 4
      %s172 = scalar_lea.vmem %s0, %s171
      %p173 = pneg %p36
      %p174 = pneg %p33
      %p175 = pneg %p57
      %p176 = pneg %p54
      %p177 = pneg %p78
      %p178 = pneg %p75
      %p179 = pneg %p99
      %p180 = pneg %p96
      %p181 = pneg %p125
      %p182 = pneg %p122
      %p183 = scmp.lt.s32.totalorder %s15, 1
      %s184 = scalar_select %p183, %s15, 1
      %s185 = smul.addr %s184, 2
      %s186 = smul.addr %s185, 4
      %s187 = scalar_lea.vmem %s4, %s186
      %p188 = scmp.lt.s32.totalorder %s15, 1
      %s189 = scalar_select %p188, %s15, 1
      %s190 = smul.addr %s189, 2
      %s191 = smul.addr %s190, 4
      %s192 = scalar_lea.vmem %s0, %s191
      %p193 = scmp.lt.s32.totalorder %s15, 1
      %s194 = scalar_select %p193, %s15, 1
      %s195 = smul.addr %s194, 2
      %s196 = smul.addr %s195, 4
      %s197 = scalar_lea.vmem %s4, %s196
      %v198 = vld [vmem:[%s3] sm:$0xf]
      %199 = vst [vmem:[#allocation2] sm:$0xf] 0.0
      %200 = vst [vmem:[#allocation2 + $0xc] sm:$0xf] 0.0
      %v201 = vld [vmem:[%s192] sm:$0xff]
      %202 = vst [vmem:[#allocation2 + $0x4] sm:$0xff] %v201
      %v203 = vld [vmem:[%s1] sm:$0xf]
      %v204 = vld [vmem:[#allocation2] sm:$0xff]
      %v205 = vld [vmem:[#allocation2 + $0x8] sm:$0xf]
      %v207 = vperm.slane %v198, 0
      %v208 = vperm.slane %v198, 2
      %v211 = vperm.slane %v207, 0
      %v212 = vperm.slane %v208, 0
      %v215 = vrot.slane %v212, 4
      %vm216 = vcmask 1043456
      %v217 = vsel %vm216, %v211, %v215
      %218 = vrot.lane.b32.xlu0 %v217, 111
      %v219 = vpop.permute.xlu0 %218
      %v220 = vrot.slane %v219, 4
      %vm221 = vcmask 908288
      %v222 = vsel %vm221, %v220, %v219
      %v225 = vmul.f32 %v204, %v222
      %v226 = vmul.f32 %v205, %v220
      %228 = vset.pattern.permute.xlu0 0
      %229 = vperm.xlu0 %228, %v203
      %v230 = vpop.permute.xlu0 %229
      %v234 = vperm.slane %v225, 0
      %v235 = vperm.slane %v225, 4
      %v236 = vperm.slane %v226, 0
      %v240 = vperm.slane %v234, 0
      %v241 = vperm.slane %v235, 0
      %v242 = vperm.slane %v236, 0
      %v243 = vmul.f32 %v230, %v240
      %v244 = vmul.f32 %v230, %v241
      %v245 = vmul.f32 %v230, %v242
      %v246 = vadd.f32 %v243, 0.0
      %v247 = vadd.f32 %v244, 0.0
      %v248 = vadd.f32 %v245, 0.0
      %249 = vset.pattern.permute.xlu0 1
      %250 = vperm.xlu0 %249, %v203
      %v251 = vpop.permute.xlu0 %250
      %v253 = vperm.slane %v225, 1
      %v254 = vperm.slane %v225, 5
      %v255 = vperm.slane %v226, 1
      %v259 = vperm.slane %v253, 1
      %v260 = vperm.slane %v254, 1
      %v261 = vperm.slane %v255, 1
      %v262 = vmul.f32 %v251, %v259
      %v263 = vmul.f32 %v251, %v260
      %v264 = vmul.f32 %v251, %v261
      %v265 = vadd.f32 %v246, %v262
      %v266 = vadd.f32 %v247, %v263
      %v267 = vadd.f32 %v248, %v264
      %268 = vset.pattern.permute.xlu0 2
      %269 = vperm.xlu0 %268, %v203
      %v270 = vpop.permute.xlu0 %269
      %v272 = vperm.slane %v225, 2
      %v273 = vperm.slane %v225, 6
      %v274 = vperm.slane %v226, 2
      %v278 = vperm.slane %v272, 2
      %v279 = vperm.slane %v273, 2
      %v280 = vperm.slane %v274, 2
      %v281 = vmul.f32 %v270, %v278
      %v282 = vmul.f32 %v270, %v279
      %v283 = vmul.f32 %v270, %v280
      %v284 = vadd.f32 %v265, %v281
      %v285 = vadd.f32 %v266, %v282
      %v286 = vadd.f32 %v267, %v283
      %287 = vset.pattern.permute.xlu0 3
      %288 = vperm.xlu0 %287, %v203
      %v289 = vpop.permute.xlu0 %288
      %v291 = vperm.slane %v225, 3
      %v292 = vperm.slane %v225, 7
      %v293 = vperm.slane %v226, 3
      %v297 = vperm.slane %v291, 3
      %v298 = vperm.slane %v292, 3
      %v299 = vperm.slane %v293, 3
      %v300 = vmul.f32 %v289, %v297
      %v301 = vmul.f32 %v289, %v298
      %v302 = vmul.f32 %v289, %v299
      %v303 = vadd.f32 %v284, %v300
      %v304 = vadd.f32 %v285, %v301
      %v305 = vadd.f32 %v286, %v302
      %306 = vset.pattern.permute.xlu0 4
      %307 = vperm.xlu0 %306, %v203
      %v308 = vpop.permute.xlu0 %307
      %v312 = vperm.slane %v204, 0
      %v313 = vperm.slane %v204, 4
      %v314 = vperm.slane %v205, 0
      %v318 = vperm.slane %v312, 0
      %v319 = vperm.slane %v313, 0
      %v320 = vperm.slane %v314, 0
      %v321 = vmul.f32 %v308, %v318
      %v322 = vmul.f32 %v308, %v319
      %v323 = vmul.f32 %v308, %v320
      %327 = vrot.lane.b32.xlu0 %v321, 127
      %v328 = vpop.permute.xlu0 %327
      %329 = vrot.lane.b32.xlu0 %v322, 127
      %v330 = vpop.permute.xlu0 %329
      %331 = vrot.lane.b32.xlu0 %v323, 127
      %v332 = vpop.permute.xlu0 %331
      %vm333 = vcmask 1039360
      %v334 = vsel %vm333, %v328, %v330
      %v335 = vsel %vm333, %v330, %v332
      %v339 = vadd.f32 %v303, %v334
      %v340 = vadd.f32 %v304, %v335
      %v341 = vadd.f32 %v305, %v332
      %342 = vset.pattern.permute.xlu0 5
      %343 = vperm.xlu0 %342, %v203
      %v344 = vpop.permute.xlu0 %343
      %v346 = vperm.slane %v204, 1
      %v347 = vperm.slane %v204, 5
      %v348 = vperm.slane %v205, 1
      %v352 = vperm.slane %v346, 1
      %v353 = vperm.slane %v347, 1
      %v354 = vperm.slane %v348, 1
      %v355 = vmul.f32 %v344, %v352
      %v356 = vmul.f32 %v344, %v353
      %v357 = vmul.f32 %v344, %v354
      %361 = vrot.lane.b32.xlu0 %v355, 127
      %v362 = vpop.permute.xlu0 %361
      %363 = vrot.lane.b32.xlu0 %v356, 127
      %v364 = vpop.permute.xlu0 %363
      %365 = vrot.lane.b32.xlu0 %v357, 127
      %v366 = vpop.permute.xlu0 %365
      %v367 = vsel %vm333, %v362, %v364
      %v368 = vsel %vm333, %v364, %v366
      %v372 = vadd.f32 %v339, %v367
      %v373 = vadd.f32 %v340, %v368
      %v374 = vadd.f32 %v341, %v366
      %375 = vset.pattern.permute.xlu0 6
      %376 = vperm.xlu0 %375, %v203
      %v377 = vpop.permute.xlu0 %376
      %v379 = vperm.slane %v204, 2
      %v380 = vperm.slane %v204, 6
      %v381 = vperm.slane %v205, 2
      %v385 = vperm.slane %v379, 2
      %v386 = vperm.slane %v380, 2
      %v387 = vperm.slane %v381, 2
      %v388 = vmul.f32 %v377, %v385
      %v389 = vmul.f32 %v377, %v386
      %v390 = vmul.f32 %v377, %v387
      %394 = vrot.lane.b32.xlu0 %v388, 127
      %v395 = vpop.permute.xlu0 %394
      %396 = vrot.lane.b32.xlu0 %v389, 127
      %v397 = vpop.permute.xlu0 %396
      %398 = vrot.lane.b32.xlu0 %v390, 127
      %v399 = vpop.permute.xlu0 %398
      %v400 = vsel %vm333, %v395, %v397
      %v401 = vsel %vm333, %v397, %v399
      %v405 = vadd.f32 %v372, %v400
      %v406 = vadd.f32 %v373, %v401
      %v407 = vadd.f32 %v374, %v399
      %408 = vset.pattern.permute.xlu0 7
      %409 = vperm.xlu0 %408, %v203
      %v410 = vpop.permute.xlu0 %409
      %v412 = vperm.slane %v204, 3
      %v413 = vperm.slane %v204, 7
      %v414 = vperm.slane %v205, 3
      %v418 = vperm.slane %v412, 3
      %v419 = vperm.slane %v413, 3
      %v420 = vperm.slane %v414, 3
      %v421 = vmul.f32 %v410, %v418
      %v422 = vmul.f32 %v410, %v419
      %v423 = vmul.f32 %v410, %v420
      %427 = vrot.lane.b32.xlu0 %v421, 127
      %v428 = vpop.permute.xlu0 %427
      %429 = vrot.lane.b32.xlu0 %v422, 127
      %v430 = vpop.permute.xlu0 %429
      %431 = vrot.lane.b32.xlu0 %v423, 127
      %v432 = vpop.permute.xlu0 %431
      %v433 = vsel %vm333, %v428, %v430
      %v434 = vsel %vm333, %v430, %v432
      %v438 = vadd.f32 %v405, %v433
      %v439 = vadd.f32 %v406, %v434
      %v440 = vadd.f32 %v407, %v432
      %v441 = vperm.slane %v198, 1
      %v442 = vperm.slane %v198, 3
      %v445 = vperm.slane %v441, 1
      %v446 = vperm.slane %v442, 1
      %v449 = vrot.slane %v446, 4
      %v450 = vsel %vm216, %v445, %v449
      %451 = vrot.lane.b32.xlu0 %v450, 113
      %v452 = vpop.permute.xlu0 %451
      %v453 = vrot.slane %v452, 4
      %vm454 = vcmask 924672
      %v455 = vsel %vm454, %v453, %v452
      %v458 = vmul.f32 %v204, %v455
      %v459 = vmul.f32 %v205, %v453
      %460 = vset.pattern.permute.xlu0 8
      %461 = vperm.xlu0 %460, %v203
      %v462 = vpop.permute.xlu0 %461
      %v466 = vperm.slane %v458, 0
      %v467 = vperm.slane %v458, 4
      %v468 = vperm.slane %v459, 0
      %v472 = vperm.slane %v466, 0
      %v473 = vperm.slane %v467, 0
      %v474 = vperm.slane %v468, 0
      %v475 = vmul.f32 %v462, %v472
      %v476 = vmul.f32 %v462, %v473
      %v477 = vmul.f32 %v462, %v474
      %481 = vrot.lane.b32.xlu0 %v475, 126
      %v482 = vpop.permute.xlu0 %481
      %483 = vrot.lane.b32.xlu0 %v476, 126
      %v484 = vpop.permute.xlu0 %483
      %485 = vrot.lane.b32.xlu0 %v477, 126
      %v486 = vpop.permute.xlu0 %485
      %vm487 = vcmask 1031168
      %v488 = vsel %vm487, %v482, %v484
      %v489 = vsel %vm487, %v484, %v486
      %v493 = vadd.f32 %v438, %v488
      %v494 = vadd.f32 %v439, %v489
      %v495 = vadd.f32 %v440, %v486
      %496 = vset.pattern.permute.xlu0 9
      %497 = vperm.xlu0 %496, %v203
      %v498 = vpop.permute.xlu0 %497
      %v500 = vperm.slane %v458, 1
      %v501 = vperm.slane %v458, 5
      %v502 = vperm.slane %v459, 1
      %v506 = vperm.slane %v500, 1
      %v507 = vperm.slane %v501, 1
      %v508 = vperm.slane %v502, 1
      %v509 = vmul.f32 %v498, %v506
      %v510 = vmul.f32 %v498, %v507
      %v511 = vmul.f32 %v498, %v508
      %515 = vrot.lane.b32.xlu0 %v509, 126
      %v516 = vpop.permute.xlu0 %515
      %517 = vrot.lane.b32.xlu0 %v510, 126
      %v518 = vpop.permute.xlu0 %517
      %519 = vrot.lane.b32.xlu0 %v511, 126
      %v520 = vpop.permute.xlu0 %519
      %v521 = vsel %vm487, %v516, %v518
      %v522 = vsel %vm487, %v518, %v520
      %v526 = vadd.f32 %v493, %v521
      %v527 = vadd.f32 %v494, %v522
      %v528 = vadd.f32 %v495, %v520
      %529 = vset.pattern.permute.xlu0 10
      %530 = vperm.xlu0 %529, %v203
      %v531 = vpop.permute.xlu0 %530
      %v533 = vperm.slane %v458, 2
      %v534 = vperm.slane %v458, 6
      %v535 = vperm.slane %v459, 2
      %v539 = vperm.slane %v533, 2
      %v540 = vperm.slane %v534, 2
      %v541 = vperm.slane %v535, 2
      %v542 = vmul.f32 %v531, %v539
      %v543 = vmul.f32 %v531, %v540
      %v544 = vmul.f32 %v531, %v541
      %548 = vrot.lane.b32.xlu0 %v542, 126
      %v549 = vpop.permute.xlu0 %548
      %550 = vrot.lane.b32.xlu0 %v543, 126
      %v551 = vpop.permute.xlu0 %550
      %552 = vrot.lane.b32.xlu0 %v544, 126
      %v553 = vpop.permute.xlu0 %552
      %v554 = vsel %vm487, %v549, %v551
      %v555 = vsel %vm487, %v551, %v553
      %v559 = vadd.f32 %v526, %v554
      %v560 = vadd.f32 %v527, %v555
      %v561 = vadd.f32 %v528, %v553
      %562 = vset.pattern.permute.xlu0 11
      %563 = vperm.xlu0 %562, %v203
      %v564 = vpop.permute.xlu0 %563
      %v566 = vperm.slane %v458, 3
      %v567 = vperm.slane %v458, 7
      %v568 = vperm.slane %v459, 3
      %v572 = vperm.slane %v566, 3
      %v573 = vperm.slane %v567, 3
      %v574 = vperm.slane %v568, 3
      %v575 = vmul.f32 %v564, %v572
      %v576 = vmul.f32 %v564, %v573
      %v577 = vmul.f32 %v564, %v574
      %581 = vrot.lane.b32.xlu0 %v575, 126
      %v582 = vpop.permute.xlu0 %581
      %583 = vrot.lane.b32.xlu0 %v576, 126
      %v584 = vpop.permute.xlu0 %583
      %585 = vrot.lane.b32.xlu0 %v577, 126
      %v586 = vpop.permute.xlu0 %585
      %v587 = vsel %vm487, %v582, %v584
      %v588 = vsel %vm487, %v584, %v586
      %v592 = vadd.f32 %v559, %v587
      %v593 = vadd.f32 %v560, %v588
      %v594 = vadd.f32 %v561, %v586
      %595 = vrot.lane.b32.xlu0 %v217, 127
      %v596 = vpop.permute.xlu0 %595
      %v597 = vrot.slane %v596, 4
      %v598 = vsel %vm333, %v597, %v596
      %v601 = vmul.f32 %v204, %v598
      %v602 = vmul.f32 %v205, %v597
      %603 = vset.pattern.permute.xlu0 12
      %604 = vperm.xlu0 %603, %v203
      %v605 = vpop.permute.xlu0 %604
      %v609 = vperm.slane %v601, 0
      %v610 = vperm.slane %v601, 4
      %v611 = vperm.slane %v602, 0
      %v615 = vperm.slane %v609, 0
      %v616 = vperm.slane %v610, 0
      %v617 = vperm.slane %v611, 0
      %v618 = vmul.f32 %v605, %v615
      %v619 = vmul.f32 %v605, %v616
      %v620 = vmul.f32 %v605, %v617
      %624 = vrot.lane.b32.xlu0 %v618, 112
      %v625 = vpop.permute.xlu0 %624
      %626 = vrot.lane.b32.xlu0 %v619, 112
      %v627 = vpop.permute.xlu0 %626
      %628 = vrot.lane.b32.xlu0 %v620, 112
      %v629 = vpop.permute.xlu0 %628
      %vm630 = vcmask 916480
      %v631 = vsel %vm630, %v625, %v627
      %v632 = vsel %vm630, %v627, %v629
      %v636 = vadd.f32 %v592, %v631
      %v637 = vadd.f32 %v593, %v632
      %v638 = vadd.f32 %v594, %v629
      %639 = vset.pattern.permute.xlu0 13
      %640 = vperm.xlu0 %639, %v203
      %v641 = vpop.permute.xlu0 %640
      %v643 = vperm.slane %v601, 1
      %v644 = vperm.slane %v601, 5
      %v645 = vperm.slane %v602, 1
      %v649 = vperm.slane %v643, 1
      %v650 = vperm.slane %v644, 1
      %v651 = vperm.slane %v645, 1
      %v652 = vmul.f32 %v641, %v649
      %v653 = vmul.f32 %v641, %v650
      %v654 = vmul.f32 %v641, %v651
      %658 = vrot.lane.b32.xlu0 %v652, 112
      %v659 = vpop.permute.xlu0 %658
      %660 = vrot.lane.b32.xlu0 %v653, 112
      %v661 = vpop.permute.xlu0 %660
      %662 = vrot.lane.b32.xlu0 %v654, 112
      %v663 = vpop.permute.xlu0 %662
      %v664 = vsel %vm630, %v659, %v661
      %v665 = vsel %vm630, %v661, %v663
      %v669 = vadd.f32 %v636, %v664
      %v670 = vadd.f32 %v637, %v665
      %v671 = vadd.f32 %v638, %v663
      %672 = vset.pattern.permute.xlu0 14
      %673 = vperm.xlu0 %672, %v203
      %v674 = vpop.permute.xlu0 %673
      %v676 = vperm.slane %v601, 2
      %v677 = vperm.slane %v601, 6
      %v678 = vperm.slane %v602, 2
      %v682 = vperm.slane %v676, 2
      %v683 = vperm.slane %v677, 2
      %v684 = vperm.slane %v678, 2
      %v685 = vmul.f32 %v674, %v682
      %v686 = vmul.f32 %v674, %v683
      %v687 = vmul.f32 %v674, %v684
      %691 = vrot.lane.b32.xlu0 %v685, 112
      %v692 = vpop.permute.xlu0 %691
      %693 = vrot.lane.b32.xlu0 %v686, 112
      %v694 = vpop.permute.xlu0 %693
      %695 = vrot.lane.b32.xlu0 %v687, 112
      %v696 = vpop.permute.xlu0 %695
      %v697 = vsel %vm630, %v692, %v694
      %v698 = vsel %vm630, %v694, %v696
      %v702 = vadd.f32 %v669, %v697
      %v703 = vadd.f32 %v670, %v698
      %v704 = vadd.f32 %v671, %v696
      %705 = vset.pattern.permute.xlu0 15
      %706 = vperm.xlu0 %705, %v203
      %v707 = vpop.permute.xlu0 %706
      %v709 = vperm.slane %v601, 3
      %v710 = vperm.slane %v601, 7
      %v711 = vperm.slane %v602, 3
      %v715 = vperm.slane %v709, 3
      %v716 = vperm.slane %v710, 3
      %v717 = vperm.slane %v711, 3
      %v718 = vmul.f32 %v707, %v715
      %v719 = vmul.f32 %v707, %v716
      %v720 = vmul.f32 %v707, %v717
      %724 = vrot.lane.b32.xlu0 %v718, 112
      %v725 = vpop.permute.xlu0 %724
      %726 = vrot.lane.b32.xlu0 %v719, 112
      %v727 = vpop.permute.xlu0 %726
      %728 = vrot.lane.b32.xlu0 %v720, 112
      %v729 = vpop.permute.xlu0 %728
      %v730 = vsel %vm630, %v725, %v727
      %v731 = vsel %vm630, %v727, %v729
      %v735 = vadd.f32 %v702, %v730
      %v736 = vadd.f32 %v703, %v731
      %v737 = vadd.f32 %v704, %v729
      %v738 = vld [vmem:[#allocation2 + $0x4] sm:$0xff]
      %739 = vset.pattern.permute.xlu0 16
      %740 = vperm.xlu0 %739, %v203
      %v741 = vpop.permute.xlu0 %740
      %v744 = vperm.slane %v738, 0
      %v745 = vperm.slane %v738, 4
      %v748 = vperm.slane %v744, 0
      %v749 = vperm.slane %v745, 0
      %v750 = vmul.f32 %v741, %v748
      %v751 = vmul.f32 %v741, %v749
      %754 = vrot.lane.b32.xlu0 %v750, 111
      %v755 = vpop.permute.xlu0 %754
      %756 = vrot.lane.b32.xlu0 %v751, 111
      %v757 = vpop.permute.xlu0 %756
      %v758 = vsel %vm221, %v755, %v757
      %v762 = vadd.f32 %v735, %v755
      %v763 = vadd.f32 %v736, %v758
      %v764 = vadd.f32 %v737, %v757
      %765 = vset.pattern.permute.xlu0 17
      %766 = vperm.xlu0 %765, %v203
      %v767 = vpop.permute.xlu0 %766
      %v769 = vperm.slane %v738, 1
      %v770 = vperm.slane %v738, 5
      %v773 = vperm.slane %v769, 1
      %v774 = vperm.slane %v770, 1
      %v775 = vmul.f32 %v767, %v773
      %v776 = vmul.f32 %v767, %v774
      %779 = vrot.lane.b32.xlu0 %v775, 111
      %v780 = vpop.permute.xlu0 %779
      %781 = vrot.lane.b32.xlu0 %v776, 111
      %v782 = vpop.permute.xlu0 %781
      %v783 = vsel %vm221, %v780, %v782
      %v787 = vadd.f32 %v762, %v780
      %v788 = vadd.f32 %v763, %v783
      %v789 = vadd.f32 %v764, %v782
      %790 = vset.pattern.permute.xlu0 18
      %791 = vperm.xlu0 %790, %v203
      %v792 = vpop.permute.xlu0 %791
      %v794 = vperm.slane %v738, 2
      %v795 = vperm.slane %v738, 6
      %v798 = vperm.slane %v794, 2
      %v799 = vperm.slane %v795, 2
      %v800 = vmul.f32 %v792, %v798
      %v801 = vmul.f32 %v792, %v799
      %804 = vrot.lane.b32.xlu0 %v800, 111
      %v805 = vpop.permute.xlu0 %804
      %806 = vrot.lane.b32.xlu0 %v801, 111
      %v807 = vpop.permute.xlu0 %806
      %v808 = vsel %vm221, %v805, %v807
      %v812 = vadd.f32 %v787, %v805
      %v813 = vadd.f32 %v788, %v808
      %v814 = vadd.f32 %v789, %v807
      %815 = vset.pattern.permute.xlu0 19
      %816 = vperm.xlu0 %815, %v203
      %v817 = vpop.permute.xlu0 %816
      %v819 = vperm.slane %v738, 3
      %v820 = vperm.slane %v738, 7
      %v823 = vperm.slane %v819, 3
      %v824 = vperm.slane %v820, 3
      %v825 = vmul.f32 %v817, %v823
      %v826 = vmul.f32 %v817, %v824
      %829 = vrot.lane.b32.xlu0 %v825, 111
      %v830 = vpop.permute.xlu0 %829
      %831 = vrot.lane.b32.xlu0 %v826, 111
      %v832 = vpop.permute.xlu0 %831
      %v833 = vsel %vm221, %v830, %v832
      %v837 = vadd.f32 %v812, %v830
      %v838 = vadd.f32 %v813, %v833
      %v839 = vadd.f32 %v814, %v832
      %v840 = vld [vmem:[#allocation2 + $0x4] sm:$0xff]
      %v841 = vld [vmem:[#allocation2 + $0xc] sm:$0xf]
      %842 = vrot.lane.b32.xlu0 %v450, 1
      %v843 = vpop.permute.xlu0 %842
      %v844 = vrot.slane %v843, 4
      %vm845 = vcmask 7168
      %v846 = vsel %vm845, %v844, %v843
      %v849 = vmul.f32 %v840, %v846
      %v850 = vmul.f32 %v841, %v844
      %851 = vset.pattern.permute.xlu0 20
      %852 = vperm.xlu0 %851, %v203
      %v853 = vpop.permute.xlu0 %852
      %v857 = vperm.slane %v849, 0
      %v858 = vperm.slane %v849, 4
      %v859 = vperm.slane %v850, 0
      %v863 = vperm.slane %v857, 0
      %v864 = vperm.slane %v858, 0
      %v865 = vperm.slane %v859, 0
      %v866 = vmul.f32 %v853, %v863
      %v867 = vmul.f32 %v853, %v864
      %v868 = vmul.f32 %v853, %v865
      %872 = vrot.lane.b32.xlu0 %v866, 110
      %v873 = vpop.permute.xlu0 %872
      %874 = vrot.lane.b32.xlu0 %v867, 110
      %v875 = vpop.permute.xlu0 %874
      %876 = vrot.lane.b32.xlu0 %v868, 110
      %v877 = vpop.permute.xlu0 %876
      %vm878 = vcmask 900096
      %v879 = vsel %vm878, %v873, %v875
      %v880 = vsel %vm878, %v875, %v877
      %v884 = vadd.f32 %v837, %v873
      %v885 = vadd.f32 %v838, %v879
      %v886 = vadd.f32 %v839, %v880
      %887 = vset.pattern.permute.xlu0 21
      %888 = vperm.xlu0 %887, %v203
      %v889 = vpop.permute.xlu0 %888
      %v891 = vperm.slane %v849, 1
      %v892 = vperm.slane %v849, 5
      %v893 = vperm.slane %v850, 1
      %v897 = vperm.slane %v891, 1
      %v898 = vperm.slane %v892, 1
      %v899 = vperm.slane %v893, 1
      %v900 = vmul.f32 %v889, %v897
      %v901 = vmul.f32 %v889, %v898
      %v902 = vmul.f32 %v889, %v899
      %906 = vrot.lane.b32.xlu0 %v900, 110
      %v907 = vpop.permute.xlu0 %906
      %908 = vrot.lane.b32.xlu0 %v901, 110
      %v909 = vpop.permute.xlu0 %908
      %910 = vrot.lane.b32.xlu0 %v902, 110
      %v911 = vpop.permute.xlu0 %910
      %v912 = vsel %vm878, %v907, %v909
      %v913 = vsel %vm878, %v909, %v911
      %v917 = vadd.f32 %v884, %v907
      %v918 = vadd.f32 %v885, %v912
      %v919 = vadd.f32 %v886, %v913
      %920 = vset.pattern.permute.xlu0 22
      %921 = vperm.xlu0 %920, %v203
      %v922 = vpop.permute.xlu0 %921
      %v924 = vperm.slane %v849, 2
      %v925 = vperm.slane %v849, 6
      %v926 = vperm.slane %v850, 2
      %v930 = vperm.slane %v924, 2
      %v931 = vperm.slane %v925, 2
      %v932 = vperm.slane %v926, 2
      %v933 = vmul.f32 %v922, %v930
      %v934 = vmul.f32 %v922, %v931
      %v935 = vmul.f32 %v922, %v932
      %939 = vrot.lane.b32.xlu0 %v933, 110
      %v940 = vpop.permute.xlu0 %939
      %941 = vrot.lane.b32.xlu0 %v934, 110
      %v942 = vpop.permute.xlu0 %941
      %943 = vrot.lane.b32.xlu0 %v935, 110
      %v944 = vpop.permute.xlu0 %943
      %v945 = vsel %vm878, %v940, %v942
      %v946 = vsel %vm878, %v942, %v944
      %v950 = vadd.f32 %v917, %v940
      %v951 = vadd.f32 %v918, %v945
      %v952 = vadd.f32 %v919, %v946
      %953 = vset.pattern.permute.xlu0 23
      %954 = vperm.xlu0 %953, %v203
      %v955 = vpop.permute.xlu0 %954
      %v957 = vperm.slane %v849, 3
      %v958 = vperm.slane %v849, 7
      %v959 = vperm.slane %v850, 3
      %v963 = vperm.slane %v957, 3
      %v964 = vperm.slane %v958, 3
      %v965 = vperm.slane %v959, 3
      %v966 = vmul.f32 %v955, %v963
      %v967 = vmul.f32 %v955, %v964
      %v968 = vmul.f32 %v955, %v965
      %972 = vrot.lane.b32.xlu0 %v966, 110
      %v973 = vpop.permute.xlu0 %972
      %974 = vrot.lane.b32.xlu0 %v967, 110
      %v975 = vpop.permute.xlu0 %974
      %976 = vrot.lane.b32.xlu0 %v968, 110
      %v977 = vpop.permute.xlu0 %976
      %v978 = vsel %vm878, %v973, %v975
      %v979 = vsel %vm878, %v975, %v977
      %v983 = vadd.f32 %v950, %v973
      %v984 = vadd.f32 %v951, %v978
      %v985 = vadd.f32 %v952, %v979
      %986 = vrot.lane.b32.xlu0 %v217, 15
      %v987 = vpop.permute.xlu0 %986
      %v988 = vrot.slane %v987, 4
      %vm989 = vcmask 121856
      %v990 = vsel %vm989, %v988, %v987
      %v993 = vmul.f32 %v840, %v990
      %v994 = vmul.f32 %v841, %v988
      %995 = vset.pattern.permute.xlu0 24
      %996 = vperm.xlu0 %995, %v203
      %v997 = vpop.permute.xlu0 %996
      %v1001 = vperm.slane %v993, 0
      %v1002 = vperm.slane %v993, 4
      %v1003 = vperm.slane %v994, 0
      %v1007 = vperm.slane %v1001, 0
      %v1008 = vperm.slane %v1002, 0
      %v1009 = vperm.slane %v1003, 0
      %v1010 = vmul.f32 %v997, %v1007
      %v1011 = vmul.f32 %v997, %v1008
      %v1012 = vmul.f32 %v997, %v1009
      %1016 = vrot.lane.b32.xlu0 %v1010, 96
      %v1017 = vpop.permute.xlu0 %1016
      %1018 = vrot.lane.b32.xlu0 %v1011, 96
      %v1019 = vpop.permute.xlu0 %1018
      %1020 = vrot.lane.b32.xlu0 %v1012, 96
      %v1021 = vpop.permute.xlu0 %1020
      %vm1022 = vcmask 785408
      %v1023 = vsel %vm1022, %v1017, %v1019
      %v1024 = vsel %vm1022, %v1019, %v1021
      %v1028 = vadd.f32 %v983, %v1017
      %v1029 = vadd.f32 %v984, %v1023
      %v1030 = vadd.f32 %v985, %v1024
      %1031 = vset.pattern.permute.xlu0 25
      %1032 = vperm.xlu0 %1031, %v203
      %v1033 = vpop.permute.xlu0 %1032
      %v1035 = vperm.slane %v993, 1
      %v1036 = vperm.slane %v993, 5
      %v1037 = vperm.slane %v994, 1
      %v1041 = vperm.slane %v1035, 1
      %v1042 = vperm.slane %v1036, 1
      %v1043 = vperm.slane %v1037, 1
      %v1044 = vmul.f32 %v1033, %v1041
      %v1045 = vmul.f32 %v1033, %v1042
      %v1046 = vmul.f32 %v1033, %v1043
      %1050 = vrot.lane.b32.xlu0 %v1044, 96
      %v1051 = vpop.permute.xlu0 %1050
      %1052 = vrot.lane.b32.xlu0 %v1045, 96
      %v1053 = vpop.permute.xlu0 %1052
      %1054 = vrot.lane.b32.xlu0 %v1046, 96
      %v1055 = vpop.permute.xlu0 %1054
      %v1056 = vsel %vm1022, %v1051, %v1053
      %v1057 = vsel %vm1022, %v1053, %v1055
      %v1061 = vadd.f32 %v1028, %v1051
      %v1062 = vadd.f32 %v1029, %v1056
      %v1063 = vadd.f32 %v1030, %v1057
      %1064 = vset.pattern.permute.xlu0 26
      %1065 = vperm.xlu0 %1064, %v203
      %v1066 = vpop.permute.xlu0 %1065
      %v1068 = vperm.slane %v993, 2
      %v1069 = vperm.slane %v993, 6
      %v1070 = vperm.slane %v994, 2
      %v1074 = vperm.slane %v1068, 2
      %v1075 = vperm.slane %v1069, 2
      %v1076 = vperm.slane %v1070, 2
      %v1077 = vmul.f32 %v1066, %v1074
      %v1078 = vmul.f32 %v1066, %v1075
      %v1079 = vmul.f32 %v1066, %v1076
      %1083 = vrot.lane.b32.xlu0 %v1077, 96
      %v1084 = vpop.permute.xlu0 %1083
      %1085 = vrot.lane.b32.xlu0 %v1078, 96
      %v1086 = vpop.permute.xlu0 %1085
      %1087 = vrot.lane.b32.xlu0 %v1079, 96
      %v1088 = vpop.permute.xlu0 %1087
      %v1089 = vsel %vm1022, %v1084, %v1086
      %v1090 = vsel %vm1022, %v1086, %v1088
      %v1094 = vadd.f32 %v1061, %v1084
      %v1095 = vadd.f32 %v1062, %v1089
      %v1096 = vadd.f32 %v1063, %v1090
      %1097 = vset.pattern.permute.xlu0 27
      %1098 = vperm.xlu0 %1097, %v203
      %v1099 = vpop.permute.xlu0 %1098
      %v1101 = vperm.slane %v993, 3
      %v1102 = vperm.slane %v993, 7
      %v1103 = vperm.slane %v994, 3
      %v1107 = vperm.slane %v1101, 3
      %v1108 = vperm.slane %v1102, 3
      %v1109 = vperm.slane %v1103, 3
      %v1110 = vmul.f32 %v1099, %v1107
      %v1111 = vmul.f32 %v1099, %v1108
      %v1112 = vmul.f32 %v1099, %v1109
      %1116 = vrot.lane.b32.xlu0 %v1110, 96
      %v1117 = vpop.permute.xlu0 %1116
      %1118 = vrot.lane.b32.xlu0 %v1111, 96
      %v1119 = vpop.permute.xlu0 %1118
      %1120 = vrot.lane.b32.xlu0 %v1112, 96
      %v1121 = vpop.permute.xlu0 %1120
      %v1122 = vsel %vm1022, %v1117, %v1119
      %v1123 = vsel %vm1022, %v1119, %v1121
      %v1127 = vadd.f32 %v1094, %v1117
      %v1128 = vadd.f32 %v1095, %v1122
      %v1129 = vadd.f32 %v1096, %v1123
      %1130 = vset.pattern.permute.xlu0 28
      %1131 = vperm.xlu0 %1130, %v203
      %v1132 = vpop.permute.xlu0 %1131
      %v1136 = vperm.slane %v840, 0
      %v1137 = vperm.slane %v840, 4
      %v1138 = vperm.slane %v841, 0
      %v1142 = vperm.slane %v1136, 0
      %v1143 = vperm.slane %v1137, 0
      %v1144 = vperm.slane %v1138, 0
      %v1145 = vmul.f32 %v1132, %v1142
      %v1146 = vmul.f32 %v1132, %v1143
      %v1147 = vmul.f32 %v1132, %v1144
      %1151 = vrot.lane.b32.xlu0 %v1145, 95
      %v1152 = vpop.permute.xlu0 %1151
      %1153 = vrot.lane.b32.xlu0 %v1146, 95
      %v1154 = vpop.permute.xlu0 %1153
      %1155 = vrot.lane.b32.xlu0 %v1147, 95
      %v1156 = vpop.permute.xlu0 %1155
      %vm1157 = vcmask 777216
      %v1158 = vsel %vm1157, %v1152, %v1154
      %v1159 = vsel %vm1157, %v1154, %v1156
      %v1163 = vadd.f32 %v1127, %v1152
      %v1164 = vadd.f32 %v1128, %v1158
      %v1165 = vadd.f32 %v1129, %v1159
      %1166 = vset.pattern.permute.xlu0 29
      %1167 = vperm.xlu0 %1166, %v203
      %v1168 = vpop.permute.xlu0 %1167
      %v1170 = vperm.slane %v840, 1
      %v1171 = vperm.slane %v840, 5
      %v1172 = vperm.slane %v841, 1
      %v1176 = vperm.slane %v1170, 1
      %v1177 = vperm.slane %v1171, 1
      %v1178 = vperm.slane %v1172, 1
      %v1179 = vmul.f32 %v1168, %v1176
      %v1180 = vmul.f32 %v1168, %v1177
      %v1181 = vmul.f32 %v1168, %v1178
      %1185 = vrot.lane.b32.xlu0 %v1179, 95
      %v1186 = vpop.permute.xlu0 %1185
      %1187 = vrot.lane.b32.xlu0 %v1180, 95
      %v1188 = vpop.permute.xlu0 %1187
      %1189 = vrot.lane.b32.xlu0 %v1181, 95
      %v1190 = vpop.permute.xlu0 %1189
      %v1191 = vsel %vm1157, %v1186, %v1188
      %v1192 = vsel %vm1157, %v1188, %v1190
      %v1196 = vadd.f32 %v1163, %v1186
      %v1197 = vadd.f32 %v1164, %v1191
      %v1198 = vadd.f32 %v1165, %v1192
      %1199 = vset.pattern.permute.xlu0 30
      %1200 = vperm.xlu0 %1199, %v203
      %v1201 = vpop.permute.xlu0 %1200
      %v1203 = vperm.slane %v840, 2
      %v1204 = vperm.slane %v840, 6
      %v1205 = vperm.slane %v841, 2
      %v1209 = vperm.slane %v1203, 2
      %v1210 = vperm.slane %v1204, 2
      %v1211 = vperm.slane %v1205, 2
      %v1212 = vmul.f32 %v1201, %v1209
      %v1213 = vmul.f32 %v1201, %v1210
      %v1214 = vmul.f32 %v1201, %v1211
      %1218 = vrot.lane.b32.xlu0 %v1212, 95
      %v1219 = vpop.permute.xlu0 %1218
      %1220 = vrot.lane.b32.xlu0 %v1213, 95
      %v1221 = vpop.permute.xlu0 %1220
      %1222 = vrot.lane.b32.xlu0 %v1214, 95
      %v1223 = vpop.permute.xlu0 %1222
      %v1224 = vsel %vm1157, %v1219, %v1221
      %v1225 = vsel %vm1157, %v1221, %v1223
      %v1229 = vadd.f32 %v1196, %v1219
      %v1230 = vadd.f32 %v1197, %v1224
      %v1231 = vadd.f32 %v1198, %v1225
      %1232 = vset.pattern.permute.xlu0 31
      %1233 = vperm.xlu0 %1232, %v203
      %v1234 = vpop.permute.xlu0 %1233
      %v1236 = vperm.slane %v840, 3
      %v1237 = vperm.slane %v840, 7
      %v1238 = vperm.slane %v841, 3
      %v1242 = vperm.slane %v1236, 3
      %v1243 = vperm.slane %v1237, 3
      %v1244 = vperm.slane %v1238, 3
      %v1245 = vmul.f32 %v1234, %v1242
      %v1246 = vmul.f32 %v1234, %v1243
      %v1247 = vmul.f32 %v1234, %v1244
      %1251 = vrot.lane.b32.xlu0 %v1245, 95
      %v1252 = vpop.permute.xlu0 %1251
      %1253 = vrot.lane.b32.xlu0 %v1246, 95
      %v1254 = vpop.permute.xlu0 %1253
      %1255 = vrot.lane.b32.xlu0 %v1247, 95
      %v1256 = vpop.permute.xlu0 %1255
      %v1257 = vsel %vm1157, %v1252, %v1254
      %v1258 = vsel %vm1157, %v1254, %v1256
      %v1262 = vadd.f32 %v1229, %v1252
      %v1263 = vadd.f32 %v1230, %v1257
      %v1264 = vadd.f32 %v1231, %v1258
      %1265 = vrot.lane.b32.xlu0 %v450, 17
      %v1266 = vpop.permute.xlu0 %1265
      %v1267 = vrot.slane %v1266, 4
      %vm1268 = vcmask 138240
      %v1269 = vsel %vm1268, %v1267, %v1266
      %v1272 = vmul.f32 %v840, %v1269
      %v1273 = vmul.f32 %v841, %v1267
      %1274 = vset.pattern.permute.xlu0 32
      %1275 = vperm.xlu0 %1274, %v203
      %v1276 = vpop.permute.xlu0 %1275
      %v1280 = vperm.slane %v1272, 0
      %v1281 = vperm.slane %v1272, 4
      %v1282 = vperm.slane %v1273, 0
      %v1286 = vperm.slane %v1280, 0
      %v1287 = vperm.slane %v1281, 0
      %v1288 = vperm.slane %v1282, 0
      %v1289 = vmul.f32 %v1276, %v1286
      %v1290 = vmul.f32 %v1276, %v1287
      %v1291 = vmul.f32 %v1276, %v1288
      %1295 = vrot.lane.b32.xlu0 %v1289, 94
      %v1296 = vpop.permute.xlu0 %1295
      %1297 = vrot.lane.b32.xlu0 %v1290, 94
      %v1298 = vpop.permute.xlu0 %1297
      %1299 = vrot.lane.b32.xlu0 %v1291, 94
      %v1300 = vpop.permute.xlu0 %1299
      %vm1301 = vcmask 769024
      %v1302 = vsel %vm1301, %v1296, %v1298
      %v1303 = vsel %vm1301, %v1298, %v1300
      %v1307 = vadd.f32 %v1262, %v1296
      %v1308 = vadd.f32 %v1263, %v1302
      %v1309 = vadd.f32 %v1264, %v1303
      %1310 = vset.pattern.permute.xlu0 33
      %1311 = vperm.xlu0 %1310, %v203
      %v1312 = vpop.permute.xlu0 %1311
      %v1314 = vperm.slane %v1272, 1
      %v1315 = vperm.slane %v1272, 5
      %v1316 = vperm.slane %v1273, 1
      %v1320 = vperm.slane %v1314, 1
      %v1321 = vperm.slane %v1315, 1
      %v1322 = vperm.slane %v1316, 1
      %v1323 = vmul.f32 %v1312, %v1320
      %v1324 = vmul.f32 %v1312, %v1321
      %v1325 = vmul.f32 %v1312, %v1322
      %1329 = vrot.lane.b32.xlu0 %v1323, 94
      %v1330 = vpop.permute.xlu0 %1329
      %1331 = vrot.lane.b32.xlu0 %v1324, 94
      %v1332 = vpop.permute.xlu0 %1331
      %1333 = vrot.lane.b32.xlu0 %v1325, 94
      %v1334 = vpop.permute.xlu0 %1333
      %v1335 = vsel %vm1301, %v1330, %v1332
      %v1336 = vsel %vm1301, %v1332, %v1334
      %v1340 = vadd.f32 %v1307, %v1330
      %v1341 = vadd.f32 %v1308, %v1335
      %v1342 = vadd.f32 %v1309, %v1336
      %1343 = vset.pattern.permute.xlu0 34
      %1344 = vperm.xlu0 %1343, %v203
      %v1345 = vpop.permute.xlu0 %1344
      %v1347 = vperm.slane %v1272, 2
      %v1348 = vperm.slane %v1272, 6
      %v1349 = vperm.slane %v1273, 2
      %v1353 = vperm.slane %v1347, 2
      %v1354 = vperm.slane %v1348, 2
      %v1355 = vperm.slane %v1349, 2
      %v1356 = vmul.f32 %v1345, %v1353
      %v1357 = vmul.f32 %v1345, %v1354
      %v1358 = vmul.f32 %v1345, %v1355
      %1362 = vrot.lane.b32.xlu0 %v1356, 94
      %v1363 = vpop.permute.xlu0 %1362
      %1364 = vrot.lane.b32.xlu0 %v1357, 94
      %v1365 = vpop.permute.xlu0 %1364
      %1366 = vrot.lane.b32.xlu0 %v1358, 94
      %v1367 = vpop.permute.xlu0 %1366
      %v1368 = vsel %vm1301, %v1363, %v1365
      %v1369 = vsel %vm1301, %v1365, %v1367
      %v1373 = vadd.f32 %v1340, %v1363
      %v1374 = vadd.f32 %v1341, %v1368
      %v1375 = vadd.f32 %v1342, %v1369
      %1376 = vset.pattern.permute.xlu0 35
      %1377 = vperm.xlu0 %1376, %v203
      %v1378 = vpop.permute.xlu0 %1377
      %v1380 = vperm.slane %v1272, 3
      %v1381 = vperm.slane %v1272, 7
      %v1382 = vperm.slane %v1273, 3
      %v1386 = vperm.slane %v1380, 3
      %v1387 = vperm.slane %v1381, 3
      %v1388 = vperm.slane %v1382, 3
      %v1389 = vmul.f32 %v1378, %v1386
      %v1390 = vmul.f32 %v1378, %v1387
      %v1391 = vmul.f32 %v1378, %v1388
      %1395 = vrot.lane.b32.xlu0 %v1389, 94
      %v1396 = vpop.permute.xlu0 %1395
      %1397 = vrot.lane.b32.xlu0 %v1390, 94
      %v1398 = vpop.permute.xlu0 %1397
      %1399 = vrot.lane.b32.xlu0 %v1391, 94
      %v1400 = vpop.permute.xlu0 %1399
      %v1401 = vsel %vm1301, %v1396, %v1398
      %v1402 = vsel %vm1301, %v1398, %v1400
      %v1406 = vadd.f32 %v1373, %v1396
      %v1407 = vadd.f32 %v1374, %v1401
      %v1408 = vadd.f32 %v1375, %v1402
      %1409 = vst [vmem:[#allocation3] sm:$0xf] 0.0
      %1410 = vst [vmem:[#allocation3 + $0xc] sm:$0xf] 0.0
      %v1414 = vrot.slane %v1407, 4
      %v1415 = vsel %vm216, %v1406, %v1414
      %1416 = vrot.lane.b32.xlu0 %v1415, 17
      %v1417 = vpop.permute.xlu0 %1416
      %1418 = vrot.lane.b32.xlu0 %v1408, 17
      %v1419 = vpop.permute.xlu0 %1418
      %v1420 = vrot.slane %v1417, 4
      %v1421 = vrot.slane %v1419, 4
      %v1422 = vsel %vm216, %v1420, %v1421
      %v1423 = vsel %vm1268, %v1417, %v1422
      %1425 = vst [vmem:[#allocation3 + $0x4] sm:$0xff] %v1423
      %v1426 = vld [vmem:[%s2] sm:$0xf]
      %v1427 = vld [vmem:[#allocation3] sm:$0xff]
      %v1428 = vld [vmem:[#allocation3 + $0x8] sm:$0xf]
      %v1429 = vmul.f32 %v1427, %v222
      %v1430 = vmul.f32 %v1428, %v220
      %1432 = vset.pattern.permute.xlu0 0
      %1433 = vperm.xlu0 %1432, %v1426
      %v1434 = vpop.permute.xlu0 %1433
      %v1438 = vperm.slane %v1429, 0
      %v1439 = vperm.slane %v1429, 4
      %v1440 = vperm.slane %v1430, 0
      %v1444 = vperm.slane %v1438, 0
      %v1445 = vperm.slane %v1439, 0
      %v1446 = vperm.slane %v1440, 0
      %v1447 = vmul.f32 %v1434, %v1444
      %v1448 = vmul.f32 %v1434, %v1445
      %v1449 = vmul.f32 %v1434, %v1446
      %v1450 = vadd.f32 %v1447, 0.0
      %v1451 = vadd.f32 %v1448, 0.0
      %v1452 = vadd.f32 %v1449, 0.0
      %1453 = vset.pattern.permute.xlu0 1
      %1454 = vperm.xlu0 %1453, %v1426
      %v1455 = vpop.permute.xlu0 %1454
      %v1457 = vperm.slane %v1429, 1
      %v1458 = vperm.slane %v1429, 5
      %v1459 = vperm.slane %v1430, 1
      %v1463 = vperm.slane %v1457, 1
      %v1464 = vperm.slane %v1458, 1
      %v1465 = vperm.slane %v1459, 1
      %v1466 = vmul.f32 %v1455, %v1463
      %v1467 = vmul.f32 %v1455, %v1464
      %v1468 = vmul.f32 %v1455, %v1465
      %v1469 = vadd.f32 %v1450, %v1466
      %v1470 = vadd.f32 %v1451, %v1467
      %v1471 = vadd.f32 %v1452, %v1468
      %1472 = vset.pattern.permute.xlu0 2
      %1473 = vperm.xlu0 %1472, %v1426
      %v1474 = vpop.permute.xlu0 %1473
      %v1476 = vperm.slane %v1429, 2
      %v1477 = vperm.slane %v1429, 6
      %v1478 = vperm.slane %v1430, 2
      %v1482 = vperm.slane %v1476, 2
      %v1483 = vperm.slane %v1477, 2
      %v1484 = vperm.slane %v1478, 2
      %v1485 = vmul.f32 %v1474, %v1482
      %v1486 = vmul.f32 %v1474, %v1483
      %v1487 = vmul.f32 %v1474, %v1484
      %v1488 = vadd.f32 %v1469, %v1485
      %v1489 = vadd.f32 %v1470, %v1486
      %v1490 = vadd.f32 %v1471, %v1487
      %1491 = vset.pattern.permute.xlu0 3
      %1492 = vperm.xlu0 %1491, %v1426
      %v1493 = vpop.permute.xlu0 %1492
      %v1495 = vperm.slane %v1429, 3
      %v1496 = vperm.slane %v1429, 7
      %v1497 = vperm.slane %v1430, 3
      %v1501 = vperm.slane %v1495, 3
      %v1502 = vperm.slane %v1496, 3
      %v1503 = vperm.slane %v1497, 3
      %v1504 = vmul.f32 %v1493, %v1501
      %v1505 = vmul.f32 %v1493, %v1502
      %v1506 = vmul.f32 %v1493, %v1503
      %v1507 = vadd.f32 %v1488, %v1504
      %v1508 = vadd.f32 %v1489, %v1505
      %v1509 = vadd.f32 %v1490, %v1506
      %1510 = vset.pattern.permute.xlu0 4
      %1511 = vperm.xlu0 %1510, %v1426
      %v1512 = vpop.permute.xlu0 %1511
      %v1516 = vperm.slane %v1427, 0
      %v1517 = vperm.slane %v1427, 4
      %v1518 = vperm.slane %v1428, 0
      %v1522 = vperm.slane %v1516, 0
      %v1523 = vperm.slane %v1517, 0
      %v1524 = vperm.slane %v1518, 0
      %v1525 = vmul.f32 %v1512, %v1522
      %v1526 = vmul.f32 %v1512, %v1523
      %v1527 = vmul.f32 %v1512, %v1524
      %1531 = vrot.lane.b32.xlu0 %v1525, 127
      %v1532 = vpop.permute.xlu0 %1531
      %1533 = vrot.lane.b32.xlu0 %v1526, 127
      %v1534 = vpop.permute.xlu0 %1533
      %1535 = vrot.lane.b32.xlu0 %v1527, 127
      %v1536 = vpop.permute.xlu0 %1535
      %v1537 = vsel %vm333, %v1532, %v1534
      %v1538 = vsel %vm333, %v1534, %v1536
      %v1542 = vadd.f32 %v1507, %v1537
      %v1543 = vadd.f32 %v1508, %v1538
      %v1544 = vadd.f32 %v1509, %v1536
      %1545 = vset.pattern.permute.xlu0 5
      %1546 = vperm.xlu0 %1545, %v1426
      %v1547 = vpop.permute.xlu0 %1546
      %v1549 = vperm.slane %v1427, 1
      %v1550 = vperm.slane %v1427, 5
      %v1551 = vperm.slane %v1428, 1
      %v1555 = vperm.slane %v1549, 1
      %v1556 = vperm.slane %v1550, 1
      %v1557 = vperm.slane %v1551, 1
      %v1558 = vmul.f32 %v1547, %v1555
      %v1559 = vmul.f32 %v1547, %v1556
      %v1560 = vmul.f32 %v1547, %v1557
      %1564 = vrot.lane.b32.xlu0 %v1558, 127
      %v1565 = vpop.permute.xlu0 %1564
      %1566 = vrot.lane.b32.xlu0 %v1559, 127
      %v1567 = vpop.permute.xlu0 %1566
      %1568 = vrot.lane.b32.xlu0 %v1560, 127
      %v1569 = vpop.permute.xlu0 %1568
      %v1570 = vsel %vm333, %v1565, %v1567
      %v1571 = vsel %vm333, %v1567, %v1569
      %v1575 = vadd.f32 %v1542, %v1570
      %v1576 = vadd.f32 %v1543, %v1571
      %v1577 = vadd.f32 %v1544, %v1569
      %1578 = vset.pattern.permute.xlu0 6
      %1579 = vperm.xlu0 %1578, %v1426
      %v1580 = vpop.permute.xlu0 %1579
      %v1582 = vperm.slane %v1427, 2
      %v1583 = vperm.slane %v1427, 6
      %v1584 = vperm.slane %v1428, 2
      %v1588 = vperm.slane %v1582, 2
      %v1589 = vperm.slane %v1583, 2
      %v1590 = vperm.slane %v1584, 2
      %v1591 = vmul.f32 %v1580, %v1588
      %v1592 = vmul.f32 %v1580, %v1589
      %v1593 = vmul.f32 %v1580, %v1590
      %1597 = vrot.lane.b32.xlu0 %v1591, 127
      %v1598 = vpop.permute.xlu0 %1597
      %1599 = vrot.lane.b32.xlu0 %v1592, 127
      %v1600 = vpop.permute.xlu0 %1599
      %1601 = vrot.lane.b32.xlu0 %v1593, 127
      %v1602 = vpop.permute.xlu0 %1601
      %v1603 = vsel %vm333, %v1598, %v1600
      %v1604 = vsel %vm333, %v1600, %v1602
      %v1608 = vadd.f32 %v1575, %v1603
      %v1609 = vadd.f32 %v1576, %v1604
      %v1610 = vadd.f32 %v1577, %v1602
      %1611 = vset.pattern.permute.xlu0 7
      %1612 = vperm.xlu0 %1611, %v1426
      %v1613 = vpop.permute.xlu0 %1612
      %v1615 = vperm.slane %v1427, 3
      %v1616 = vperm.slane %v1427, 7
      %v1617 = vperm.slane %v1428, 3
      %v1621 = vperm.slane %v1615, 3
      %v1622 = vperm.slane %v1616, 3
      %v1623 = vperm.slane %v1617, 3
      %v1624 = vmul.f32 %v1613, %v1621
      %v1625 = vmul.f32 %v1613, %v1622
      %v1626 = vmul.f32 %v1613, %v1623
      %1630 = vrot.lane.b32.xlu0 %v1624, 127
      %v1631 = vpop.permute.xlu0 %1630
      %1632 = vrot.lane.b32.xlu0 %v1625, 127
      %v1633 = vpop.permute.xlu0 %1632
      %1634 = vrot.lane.b32.xlu0 %v1626, 127
      %v1635 = vpop.permute.xlu0 %1634
      %v1636 = vsel %vm333, %v1631, %v1633
      %v1637 = vsel %vm333, %v1633, %v1635
      %v1641 = vadd.f32 %v1608, %v1636
      %v1642 = vadd.f32 %v1609, %v1637
      %v1643 = vadd.f32 %v1610, %v1635
      %v1644 = vmul.f32 %v1427, %v455
      %v1645 = vmul.f32 %v1428, %v453
      %1646 = vset.pattern.permute.xlu0 8
      %1647 = vperm.xlu0 %1646, %v1426
      %v1648 = vpop.permute.xlu0 %1647
      %v1652 = vperm.slane %v1644, 0
      %v1653 = vperm.slane %v1644, 4
      %v1654 = vperm.slane %v1645, 0
      %v1658 = vperm.slane %v1652, 0
      %v1659 = vperm.slane %v1653, 0
      %v1660 = vperm.slane %v1654, 0
      %v1661 = vmul.f32 %v1648, %v1658
      %v1662 = vmul.f32 %v1648, %v1659
      %v1663 = vmul.f32 %v1648, %v1660
      %1667 = vrot.lane.b32.xlu0 %v1661, 126
      %v1668 = vpop.permute.xlu0 %1667
      %1669 = vrot.lane.b32.xlu0 %v1662, 126
      %v1670 = vpop.permute.xlu0 %1669
      %1671 = vrot.lane.b32.xlu0 %v1663, 126
      %v1672 = vpop.permute.xlu0 %1671
      %v1673 = vsel %vm487, %v1668, %v1670
      %v1674 = vsel %vm487, %v1670, %v1672
      %v1678 = vadd.f32 %v1641, %v1673
      %v1679 = vadd.f32 %v1642, %v1674
      %v1680 = vadd.f32 %v1643, %v1672
      %1681 = vset.pattern.permute.xlu0 9
      %1682 = vperm.xlu0 %1681, %v1426
      %v1683 = vpop.permute.xlu0 %1682
      %v1685 = vperm.slane %v1644, 1
      %v1686 = vperm.slane %v1644, 5
      %v1687 = vperm.slane %v1645, 1
      %v1691 = vperm.slane %v1685, 1
      %v1692 = vperm.slane %v1686, 1
      %v1693 = vperm.slane %v1687, 1
      %v1694 = vmul.f32 %v1683, %v1691
      %v1695 = vmul.f32 %v1683, %v1692
      %v1696 = vmul.f32 %v1683, %v1693
      %1700 = vrot.lane.b32.xlu0 %v1694, 126
      %v1701 = vpop.permute.xlu0 %1700
      %1702 = vrot.lane.b32.xlu0 %v1695, 126
      %v1703 = vpop.permute.xlu0 %1702
      %1704 = vrot.lane.b32.xlu0 %v1696, 126
      %v1705 = vpop.permute.xlu0 %1704
      %v1706 = vsel %vm487, %v1701, %v1703
      %v1707 = vsel %vm487, %v1703, %v1705
      %v1711 = vadd.f32 %v1678, %v1706
      %v1712 = vadd.f32 %v1679, %v1707
      %v1713 = vadd.f32 %v1680, %v1705
      %1714 = vset.pattern.permute.xlu0 10
      %1715 = vperm.xlu0 %1714, %v1426
      %v1716 = vpop.permute.xlu0 %1715
      %v1718 = vperm.slane %v1644, 2
      %v1719 = vperm.slane %v1644, 6
      %v1720 = vperm.slane %v1645, 2
      %v1724 = vperm.slane %v1718, 2
      %v1725 = vperm.slane %v1719, 2
      %v1726 = vperm.slane %v1720, 2
      %v1727 = vmul.f32 %v1716, %v1724
      %v1728 = vmul.f32 %v1716, %v1725
      %v1729 = vmul.f32 %v1716, %v1726
      %1733 = vrot.lane.b32.xlu0 %v1727, 126
      %v1734 = vpop.permute.xlu0 %1733
      %1735 = vrot.lane.b32.xlu0 %v1728, 126
      %v1736 = vpop.permute.xlu0 %1735
      %1737 = vrot.lane.b32.xlu0 %v1729, 126
      %v1738 = vpop.permute.xlu0 %1737
      %v1739 = vsel %vm487, %v1734, %v1736
      %v1740 = vsel %vm487, %v1736, %v1738
      %v1744 = vadd.f32 %v1711, %v1739
      %v1745 = vadd.f32 %v1712, %v1740
      %v1746 = vadd.f32 %v1713, %v1738
      %1747 = vset.pattern.permute.xlu0 11
      %1748 = vperm.xlu0 %1747, %v1426
      %v1749 = vpop.permute.xlu0 %1748
      %v1751 = vperm.slane %v1644, 3
      %v1752 = vperm.slane %v1644, 7
      %v1753 = vperm.slane %v1645, 3
      %v1757 = vperm.slane %v1751, 3
      %v1758 = vperm.slane %v1752, 3
      %v1759 = vperm.slane %v1753, 3
      %v1760 = vmul.f32 %v1749, %v1757
      %v1761 = vmul.f32 %v1749, %v1758
      %v1762 = vmul.f32 %v1749, %v1759
      %1766 = vrot.lane.b32.xlu0 %v1760, 126
      %v1767 = vpop.permute.xlu0 %1766
      %1768 = vrot.lane.b32.xlu0 %v1761, 126
      %v1769 = vpop.permute.xlu0 %1768
      %1770 = vrot.lane.b32.xlu0 %v1762, 126
      %v1771 = vpop.permute.xlu0 %1770
      %v1772 = vsel %vm487, %v1767, %v1769
      %v1773 = vsel %vm487, %v1769, %v1771
      %v1777 = vadd.f32 %v1744, %v1772
      %v1778 = vadd.f32 %v1745, %v1773
      %v1779 = vadd.f32 %v1746, %v1771
      %v1780 = vmul.f32 %v1427, %v598
      %v1781 = vmul.f32 %v1428, %v597
      %1782 = vset.pattern.permute.xlu0 12
      %1783 = vperm.xlu0 %1782, %v1426
      %v1784 = vpop.permute.xlu0 %1783
      %v1788 = vperm.slane %v1780, 0
      %v1789 = vperm.slane %v1780, 4
      %v1790 = vperm.slane %v1781, 0
      %v1794 = vperm.slane %v1788, 0
      %v1795 = vperm.slane %v1789, 0
      %v1796 = vperm.slane %v1790, 0
      %v1797 = vmul.f32 %v1784, %v1794
      %v1798 = vmul.f32 %v1784, %v1795
      %v1799 = vmul.f32 %v1784, %v1796
      %1803 = vrot.lane.b32.xlu0 %v1797, 112
      %v1804 = vpop.permute.xlu0 %1803
      %1805 = vrot.lane.b32.xlu0 %v1798, 112
      %v1806 = vpop.permute.xlu0 %1805
      %1807 = vrot.lane.b32.xlu0 %v1799, 112
      %v1808 = vpop.permute.xlu0 %1807
      %v1809 = vsel %vm630, %v1804, %v1806
      %v1810 = vsel %vm630, %v1806, %v1808
      %v1814 = vadd.f32 %v1777, %v1809
      %v1815 = vadd.f32 %v1778, %v1810
      %v1816 = vadd.f32 %v1779, %v1808
      %1817 = vset.pattern.permute.xlu0 13
      %1818 = vperm.xlu0 %1817, %v1426
      %v1819 = vpop.permute.xlu0 %1818
      %v1821 = vperm.slane %v1780, 1
      %v1822 = vperm.slane %v1780, 5
      %v1823 = vperm.slane %v1781, 1
      %v1827 = vperm.slane %v1821, 1
      %v1828 = vperm.slane %v1822, 1
      %v1829 = vperm.slane %v1823, 1
      %v1830 = vmul.f32 %v1819, %v1827
      %v1831 = vmul.f32 %v1819, %v1828
      %v1832 = vmul.f32 %v1819, %v1829
      %1836 = vrot.lane.b32.xlu0 %v1830, 112
      %v1837 = vpop.permute.xlu0 %1836
      %1838 = vrot.lane.b32.xlu0 %v1831, 112
      %v1839 = vpop.permute.xlu0 %1838
      %1840 = vrot.lane.b32.xlu0 %v1832, 112
      %v1841 = vpop.permute.xlu0 %1840
      %v1842 = vsel %vm630, %v1837, %v1839
      %v1843 = vsel %vm630, %v1839, %v1841
      %v1847 = vadd.f32 %v1814, %v1842
      %v1848 = vadd.f32 %v1815, %v1843
      %v1849 = vadd.f32 %v1816, %v1841
      %1850 = vset.pattern.permute.xlu0 14
      %1851 = vperm.xlu0 %1850, %v1426
      %v1852 = vpop.permute.xlu0 %1851
      %v1854 = vperm.slane %v1780, 2
      %v1855 = vperm.slane %v1780, 6
      %v1856 = vperm.slane %v1781, 2
      %v1860 = vperm.slane %v1854, 2
      %v1861 = vperm.slane %v1855, 2
      %v1862 = vperm.slane %v1856, 2
      %v1863 = vmul.f32 %v1852, %v1860
      %v1864 = vmul.f32 %v1852, %v1861
      %v1865 = vmul.f32 %v1852, %v1862
      %1869 = vrot.lane.b32.xlu0 %v1863, 112
      %v1870 = vpop.permute.xlu0 %1869
      %1871 = vrot.lane.b32.xlu0 %v1864, 112
      %v1872 = vpop.permute.xlu0 %1871
      %1873 = vrot.lane.b32.xlu0 %v1865, 112
      %v1874 = vpop.permute.xlu0 %1873
      %v1875 = vsel %vm630, %v1870, %v1872
      %v1876 = vsel %vm630, %v1872, %v1874
      %v1880 = vadd.f32 %v1847, %v1875
      %v1881 = vadd.f32 %v1848, %v1876
      %v1882 = vadd.f32 %v1849, %v1874
      %1883 = vset.pattern.permute.xlu0 15
      %1884 = vperm.xlu0 %1883, %v1426
      %v1885 = vpop.permute.xlu0 %1884
      %v1887 = vperm.slane %v1780, 3
      %v1888 = vperm.slane %v1780, 7
      %v1889 = vperm.slane %v1781, 3
      %v1893 = vperm.slane %v1887, 3
      %v1894 = vperm.slane %v1888, 3
      %v1895 = vperm.slane %v1889, 3
      %v1896 = vmul.f32 %v1885, %v1893
      %v1897 = vmul.f32 %v1885, %v1894
      %v1898 = vmul.f32 %v1885, %v1895
      %1902 = vrot.lane.b32.xlu0 %v1896, 112
      %v1903 = vpop.permute.xlu0 %1902
      %1904 = vrot.lane.b32.xlu0 %v1897, 112
      %v1905 = vpop.permute.xlu0 %1904
      %1906 = vrot.lane.b32.xlu0 %v1898, 112
      %v1907 = vpop.permute.xlu0 %1906
      %v1908 = vsel %vm630, %v1903, %v1905
      %v1909 = vsel %vm630, %v1905, %v1907
      %v1913 = vadd.f32 %v1880, %v1908
      %v1914 = vadd.f32 %v1881, %v1909
      %v1915 = vadd.f32 %v1882, %v1907
      %v1916 = vld [vmem:[#allocation3 + $0x4] sm:$0xff]
      %1917 = vset.pattern.permute.xlu0 16
      %1918 = vperm.xlu0 %1917, %v1426
      %v1919 = vpop.permute.xlu0 %1918
      %v1922 = vperm.slane %v1916, 0
      %v1923 = vperm.slane %v1916, 4
      %v1926 = vperm.slane %v1922, 0
      %v1927 = vperm.slane %v1923, 0
      %v1928 = vmul.f32 %v1919, %v1926
      %v1929 = vmul.f32 %v1919, %v1927
      %1932 = vrot.lane.b32.xlu0 %v1928, 111
      %v1933 = vpop.permute.xlu0 %1932
      %1934 = vrot.lane.b32.xlu0 %v1929, 111
      %v1935 = vpop.permute.xlu0 %1934
      %v1936 = vsel %vm221, %v1933, %v1935
      %v1940 = vadd.f32 %v1913, %v1933
      %v1941 = vadd.f32 %v1914, %v1936
      %v1942 = vadd.f32 %v1915, %v1935
      %1943 = vset.pattern.permute.xlu0 17
      %1944 = vperm.xlu0 %1943, %v1426
      %v1945 = vpop.permute.xlu0 %1944
      %v1947 = vperm.slane %v1916, 1
      %v1948 = vperm.slane %v1916, 5
      %v1951 = vperm.slane %v1947, 1
      %v1952 = vperm.slane %v1948, 1
      %v1953 = vmul.f32 %v1945, %v1951
      %v1954 = vmul.f32 %v1945, %v1952
      %1957 = vrot.lane.b32.xlu0 %v1953, 111
      %v1958 = vpop.permute.xlu0 %1957
      %1959 = vrot.lane.b32.xlu0 %v1954, 111
      %v1960 = vpop.permute.xlu0 %1959
      %v1961 = vsel %vm221, %v1958, %v1960
      %v1965 = vadd.f32 %v1940, %v1958
      %v1966 = vadd.f32 %v1941, %v1961
      %v1967 = vadd.f32 %v1942, %v1960
      %1968 = vset.pattern.permute.xlu0 18
      %1969 = vperm.xlu0 %1968, %v1426
      %v1970 = vpop.permute.xlu0 %1969
      %v1972 = vperm.slane %v1916, 2
      %v1973 = vperm.slane %v1916, 6
      %v1976 = vperm.slane %v1972, 2
      %v1977 = vperm.slane %v1973, 2
      %v1978 = vmul.f32 %v1970, %v1976
      %v1979 = vmul.f32 %v1970, %v1977
      %1982 = vrot.lane.b32.xlu0 %v1978, 111
      %v1983 = vpop.permute.xlu0 %1982
      %1984 = vrot.lane.b32.xlu0 %v1979, 111
      %v1985 = vpop.permute.xlu0 %1984
      %v1986 = vsel %vm221, %v1983, %v1985
      %v1990 = vadd.f32 %v1965, %v1983
      %v1991 = vadd.f32 %v1966, %v1986
      %v1992 = vadd.f32 %v1967, %v1985
      %1993 = vset.pattern.permute.xlu0 19
      %1994 = vperm.xlu0 %1993, %v1426
      %v1995 = vpop.permute.xlu0 %1994
      %v1997 = vperm.slane %v1916, 3
      %v1998 = vperm.slane %v1916, 7
      %v2001 = vperm.slane %v1997, 3
      %v2002 = vperm.slane %v1998, 3
      %v2003 = vmul.f32 %v1995, %v2001
      %v2004 = vmul.f32 %v1995, %v2002
      %2007 = vrot.lane.b32.xlu0 %v2003, 111
      %v2008 = vpop.permute.xlu0 %2007
      %2009 = vrot.lane.b32.xlu0 %v2004, 111
      %v2010 = vpop.permute.xlu0 %2009
      %v2011 = vsel %vm221, %v2008, %v2010
      %v2015 = vadd.f32 %v1990, %v2008
      %v2016 = vadd.f32 %v1991, %v2011
      %v2017 = vadd.f32 %v1992, %v2010
      %v2018 = vld [vmem:[#allocation3 + $0x4] sm:$0xff]
      %v2019 = vld [vmem:[#allocation3 + $0xc] sm:$0xf]
      %v2020 = vmul.f32 %v2018, %v846
      %v2021 = vmul.f32 %v2019, %v844
      %2022 = vset.pattern.permute.xlu0 20
      %2023 = vperm.xlu0 %2022, %v1426
      %v2024 = vpop.permute.xlu0 %2023
      %v2028 = vperm.slane %v2020, 0
      %v2029 = vperm.slane %v2020, 4
      %v2030 = vperm.slane %v2021, 0
      %v2034 = vperm.slane %v2028, 0
      %v2035 = vperm.slane %v2029, 0
      %v2036 = vperm.slane %v2030, 0
      %v2037 = vmul.f32 %v2024, %v2034
      %v2038 = vmul.f32 %v2024, %v2035
      %v2039 = vmul.f32 %v2024, %v2036
      %2043 = vrot.lane.b32.xlu0 %v2037, 110
      %v2044 = vpop.permute.xlu0 %2043
      %2045 = vrot.lane.b32.xlu0 %v2038, 110
      %v2046 = vpop.permute.xlu0 %2045
      %2047 = vrot.lane.b32.xlu0 %v2039, 110
      %v2048 = vpop.permute.xlu0 %2047
      %v2049 = vsel %vm878, %v2044, %v2046
      %v2050 = vsel %vm878, %v2046, %v2048
      %v2054 = vadd.f32 %v2015, %v2044
      %v2055 = vadd.f32 %v2016, %v2049
      %v2056 = vadd.f32 %v2017, %v2050
      %2057 = vset.pattern.permute.xlu0 21
      %2058 = vperm.xlu0 %2057, %v1426
      %v2059 = vpop.permute.xlu0 %2058
      %v2061 = vperm.slane %v2020, 1
      %v2062 = vperm.slane %v2020, 5
      %v2063 = vperm.slane %v2021, 1
      %v2067 = vperm.slane %v2061, 1
      %v2068 = vperm.slane %v2062, 1
      %v2069 = vperm.slane %v2063, 1
      %v2070 = vmul.f32 %v2059, %v2067
      %v2071 = vmul.f32 %v2059, %v2068
      %v2072 = vmul.f32 %v2059, %v2069
      %2076 = vrot.lane.b32.xlu0 %v2070, 110
      %v2077 = vpop.permute.xlu0 %2076
      %2078 = vrot.lane.b32.xlu0 %v2071, 110
      %v2079 = vpop.permute.xlu0 %2078
      %2080 = vrot.lane.b32.xlu0 %v2072, 110
      %v2081 = vpop.permute.xlu0 %2080
      %v2082 = vsel %vm878, %v2077, %v2079
      %v2083 = vsel %vm878, %v2079, %v2081
      %v2087 = vadd.f32 %v2054, %v2077
      %v2088 = vadd.f32 %v2055, %v2082
      %v2089 = vadd.f32 %v2056, %v2083
      %2090 = vset.pattern.permute.xlu0 22
      %2091 = vperm.xlu0 %2090, %v1426
      %v2092 = vpop.permute.xlu0 %2091
      %v2094 = vperm.slane %v2020, 2
      %v2095 = vperm.slane %v2020, 6
      %v2096 = vperm.slane %v2021, 2
      %v2100 = vperm.slane %v2094, 2
      %v2101 = vperm.slane %v2095, 2
      %v2102 = vperm.slane %v2096, 2
      %v2103 = vmul.f32 %v2092, %v2100
      %v2104 = vmul.f32 %v2092, %v2101
      %v2105 = vmul.f32 %v2092, %v2102
      %2109 = vrot.lane.b32.xlu0 %v2103, 110
      %v2110 = vpop.permute.xlu0 %2109
      %2111 = vrot.lane.b32.xlu0 %v2104, 110
      %v2112 = vpop.permute.xlu0 %2111
      %2113 = vrot.lane.b32.xlu0 %v2105, 110
      %v2114 = vpop.permute.xlu0 %2113
      %v2115 = vsel %vm878, %v2110, %v2112
      %v2116 = vsel %vm878, %v2112, %v2114
      %v2120 = vadd.f32 %v2087, %v2110
      %v2121 = vadd.f32 %v2088, %v2115
      %v2122 = vadd.f32 %v2089, %v2116
      %2123 = vset.pattern.permute.xlu0 23
      %2124 = vperm.xlu0 %2123, %v1426
      %v2125 = vpop.permute.xlu0 %2124
      %v2127 = vperm.slane %v2020, 3
      %v2128 = vperm.slane %v2020, 7
      %v2129 = vperm.slane %v2021, 3
      %v2133 = vperm.slane %v2127, 3
      %v2134 = vperm.slane %v2128, 3
      %v2135 = vperm.slane %v2129, 3
      %v2136 = vmul.f32 %v2125, %v2133
      %v2137 = vmul.f32 %v2125, %v2134
      %v2138 = vmul.f32 %v2125, %v2135
      %2142 = vrot.lane.b32.xlu0 %v2136, 110
      %v2143 = vpop.permute.xlu0 %2142
      %2144 = vrot.lane.b32.xlu0 %v2137, 110
      %v2145 = vpop.permute.xlu0 %2144
      %2146 = vrot.lane.b32.xlu0 %v2138, 110
      %v2147 = vpop.permute.xlu0 %2146
      %v2148 = vsel %vm878, %v2143, %v2145
      %v2149 = vsel %vm878, %v2145, %v2147
      %v2153 = vadd.f32 %v2120, %v2143
      %v2154 = vadd.f32 %v2121, %v2148
      %v2155 = vadd.f32 %v2122, %v2149
      %v2156 = vmul.f32 %v2018, %v990
      %v2157 = vmul.f32 %v2019, %v988
      %2158 = vset.pattern.permute.xlu0 24
      %2159 = vperm.xlu0 %2158, %v1426
      %v2160 = vpop.permute.xlu0 %2159
      %v2164 = vperm.slane %v2156, 0
      %v2165 = vperm.slane %v2156, 4
      %v2166 = vperm.slane %v2157, 0
      %v2170 = vperm.slane %v2164, 0
      %v2171 = vperm.slane %v2165, 0
      %v2172 = vperm.slane %v2166, 0
      %v2173 = vmul.f32 %v2160, %v2170
      %v2174 = vmul.f32 %v2160, %v2171
      %v2175 = vmul.f32 %v2160, %v2172
      %2179 = vrot.lane.b32.xlu0 %v2173, 96
      %v2180 = vpop.permute.xlu0 %2179
      %2181 = vrot.lane.b32.xlu0 %v2174, 96
      %v2182 = vpop.permute.xlu0 %2181
      %2183 = vrot.lane.b32.xlu0 %v2175, 96
      %v2184 = vpop.permute.xlu0 %2183
      %v2185 = vsel %vm1022, %v2180, %v2182
      %v2186 = vsel %vm1022, %v2182, %v2184
      %v2190 = vadd.f32 %v2153, %v2180
      %v2191 = vadd.f32 %v2154, %v2185
      %v2192 = vadd.f32 %v2155, %v2186
      %2193 = vset.pattern.permute.xlu0 25
      %2194 = vperm.xlu0 %2193, %v1426
      %v2195 = vpop.permute.xlu0 %2194
      %v2197 = vperm.slane %v2156, 1
      %v2198 = vperm.slane %v2156, 5
      %v2199 = vperm.slane %v2157, 1
      %v2203 = vperm.slane %v2197, 1
      %v2204 = vperm.slane %v2198, 1
      %v2205 = vperm.slane %v2199, 1
      %v2206 = vmul.f32 %v2195, %v2203
      %v2207 = vmul.f32 %v2195, %v2204
      %v2208 = vmul.f32 %v2195, %v2205
      %2212 = vrot.lane.b32.xlu0 %v2206, 96
      %v2213 = vpop.permute.xlu0 %2212
      %2214 = vrot.lane.b32.xlu0 %v2207, 96
      %v2215 = vpop.permute.xlu0 %2214
      %2216 = vrot.lane.b32.xlu0 %v2208, 96
      %v2217 = vpop.permute.xlu0 %2216
      %v2218 = vsel %vm1022, %v2213, %v2215
      %v2219 = vsel %vm1022, %v2215, %v2217
      %v2223 = vadd.f32 %v2190, %v2213
      %v2224 = vadd.f32 %v2191, %v2218
      %v2225 = vadd.f32 %v2192, %v2219
      %2226 = vset.pattern.permute.xlu0 26
      %2227 = vperm.xlu0 %2226, %v1426
      %v2228 = vpop.permute.xlu0 %2227
      %v2230 = vperm.slane %v2156, 2
      %v2231 = vperm.slane %v2156, 6
      %v2232 = vperm.slane %v2157, 2
      %v2236 = vperm.slane %v2230, 2
      %v2237 = vperm.slane %v2231, 2
      %v2238 = vperm.slane %v2232, 2
      %v2239 = vmul.f32 %v2228, %v2236
      %v2240 = vmul.f32 %v2228, %v2237
      %v2241 = vmul.f32 %v2228, %v2238
      %2245 = vrot.lane.b32.xlu0 %v2239, 96
      %v2246 = vpop.permute.xlu0 %2245
      %2247 = vrot.lane.b32.xlu0 %v2240, 96
      %v2248 = vpop.permute.xlu0 %2247
      %2249 = vrot.lane.b32.xlu0 %v2241, 96
      %v2250 = vpop.permute.xlu0 %2249
      %v2251 = vsel %vm1022, %v2246, %v2248
      %v2252 = vsel %vm1022, %v2248, %v2250
      %v2256 = vadd.f32 %v2223, %v2246
      %v2257 = vadd.f32 %v2224, %v2251
      %v2258 = vadd.f32 %v2225, %v2252
      %2259 = vset.pattern.permute.xlu0 27
      %2260 = vperm.xlu0 %2259, %v1426
      %v2261 = vpop.permute.xlu0 %2260
      %v2263 = vperm.slane %v2156, 3
      %v2264 = vperm.slane %v2156, 7
      %v2265 = vperm.slane %v2157, 3
      %v2269 = vperm.slane %v2263, 3
      %v2270 = vperm.slane %v2264, 3
      %v2271 = vperm.slane %v2265, 3
      %v2272 = vmul.f32 %v2261, %v2269
      %v2273 = vmul.f32 %v2261, %v2270
      %v2274 = vmul.f32 %v2261, %v2271
      %2278 = vrot.lane.b32.xlu0 %v2272, 96
      %v2279 = vpop.permute.xlu0 %2278
      %2280 = vrot.lane.b32.xlu0 %v2273, 96
      %v2281 = vpop.permute.xlu0 %2280
      %2282 = vrot.lane.b32.xlu0 %v2274, 96
      %v2283 = vpop.permute.xlu0 %2282
      %v2284 = vsel %vm1022, %v2279, %v2281
      %v2285 = vsel %vm1022, %v2281, %v2283
      %v2289 = vadd.f32 %v2256, %v2279
      %v2290 = vadd.f32 %v2257, %v2284
      %v2291 = vadd.f32 %v2258, %v2285
      %2292 = vset.pattern.permute.xlu0 28
      %2293 = vperm.xlu0 %2292, %v1426
      %v2294 = vpop.permute.xlu0 %2293
      %v2298 = vperm.slane %v2018, 0
      %v2299 = vperm.slane %v2018, 4
      %v2300 = vperm.slane %v2019, 0
      %v2304 = vperm.slane %v2298, 0
      %v2305 = vperm.slane %v2299, 0
      %v2306 = vperm.slane %v2300, 0
      %v2307 = vmul.f32 %v2294, %v2304
      %v2308 = vmul.f32 %v2294, %v2305
      %v2309 = vmul.f32 %v2294, %v2306
      %2313 = vrot.lane.b32.xlu0 %v2307, 95
      %v2314 = vpop.permute.xlu0 %2313
      %2315 = vrot.lane.b32.xlu0 %v2308, 95
      %v2316 = vpop.permute.xlu0 %2315
      %2317 = vrot.lane.b32.xlu0 %v2309, 95
      %v2318 = vpop.permute.xlu0 %2317
      %v2319 = vsel %vm1157, %v2314, %v2316
      %v2320 = vsel %vm1157, %v2316, %v2318
      %v2324 = vadd.f32 %v2289, %v2314
      %v2325 = vadd.f32 %v2290, %v2319
      %v2326 = vadd.f32 %v2291, %v2320
      %2327 = vset.pattern.permute.xlu0 29
      %2328 = vperm.xlu0 %2327, %v1426
      %v2329 = vpop.permute.xlu0 %2328
      %v2331 = vperm.slane %v2018, 1
      %v2332 = vperm.slane %v2018, 5
      %v2333 = vperm.slane %v2019, 1
      %v2337 = vperm.slane %v2331, 1
      %v2338 = vperm.slane %v2332, 1
      %v2339 = vperm.slane %v2333, 1
      %v2340 = vmul.f32 %v2329, %v2337
      %v2341 = vmul.f32 %v2329, %v2338
      %v2342 = vmul.f32 %v2329, %v2339
      %2346 = vrot.lane.b32.xlu0 %v2340, 95
      %v2347 = vpop.permute.xlu0 %2346
      %2348 = vrot.lane.b32.xlu0 %v2341, 95
      %v2349 = vpop.permute.xlu0 %2348
      %2350 = vrot.lane.b32.xlu0 %v2342, 95
      %v2351 = vpop.permute.xlu0 %2350
      %v2352 = vsel %vm1157, %v2347, %v2349
      %v2353 = vsel %vm1157, %v2349, %v2351
      %v2357 = vadd.f32 %v2324, %v2347
      %v2358 = vadd.f32 %v2325, %v2352
      %v2359 = vadd.f32 %v2326, %v2353
      %2360 = vset.pattern.permute.xlu0 30
      %2361 = vperm.xlu0 %2360, %v1426
      %v2362 = vpop.permute.xlu0 %2361
      %v2364 = vperm.slane %v2018, 2
      %v2365 = vperm.slane %v2018, 6
      %v2366 = vperm.slane %v2019, 2
      %v2370 = vperm.slane %v2364, 2
      %v2371 = vperm.slane %v2365, 2
      %v2372 = vperm.slane %v2366, 2
      %v2373 = vmul.f32 %v2362, %v2370
      %v2374 = vmul.f32 %v2362, %v2371
      %v2375 = vmul.f32 %v2362, %v2372
      %2379 = vrot.lane.b32.xlu0 %v2373, 95
      %v2380 = vpop.permute.xlu0 %2379
      %2381 = vrot.lane.b32.xlu0 %v2374, 95
      %v2382 = vpop.permute.xlu0 %2381
      %2383 = vrot.lane.b32.xlu0 %v2375, 95
      %v2384 = vpop.permute.xlu0 %2383
      %v2385 = vsel %vm1157, %v2380, %v2382
      %v2386 = vsel %vm1157, %v2382, %v2384
      %v2390 = vadd.f32 %v2357, %v2380
      %v2391 = vadd.f32 %v2358, %v2385
      %v2392 = vadd.f32 %v2359, %v2386
      %2393 = vset.pattern.permute.xlu0 31
      %2394 = vperm.xlu0 %2393, %v1426
      %v2395 = vpop.permute.xlu0 %2394
      %v2397 = vperm.slane %v2018, 3
      %v2398 = vperm.slane %v2018, 7
      %v2399 = vperm.slane %v2019, 3
      %v2403 = vperm.slane %v2397, 3
      %v2404 = vperm.slane %v2398, 3
      %v2405 = vperm.slane %v2399, 3
      %v2406 = vmul.f32 %v2395, %v2403
      %v2407 = vmul.f32 %v2395, %v2404
      %v2408 = vmul.f32 %v2395, %v2405
      %2412 = vrot.lane.b32.xlu0 %v2406, 95
      %v2413 = vpop.permute.xlu0 %2412
      %2414 = vrot.lane.b32.xlu0 %v2407, 95
      %v2415 = vpop.permute.xlu0 %2414
      %2416 = vrot.lane.b32.xlu0 %v2408, 95
      %v2417 = vpop.permute.xlu0 %2416
      %v2418 = vsel %vm1157, %v2413, %v2415
      %v2419 = vsel %vm1157, %v2415, %v2417
      %v2423 = vadd.f32 %v2390, %v2413
      %v2424 = vadd.f32 %v2391, %v2418
      %v2425 = vadd.f32 %v2392, %v2419
      %v2426 = vmul.f32 %v2018, %v1269
      %v2427 = vmul.f32 %v2019, %v1267
      %2428 = vset.pattern.permute.xlu0 32
      %2429 = vperm.xlu0 %2428, %v1426
      %v2430 = vpop.permute.xlu0 %2429
      %v2434 = vperm.slane %v2426, 0
      %v2435 = vperm.slane %v2426, 4
      %v2436 = vperm.slane %v2427, 0
      %v2440 = vperm.slane %v2434, 0
      %v2441 = vperm.slane %v2435, 0
      %v2442 = vperm.slane %v2436, 0
      %v2443 = vmul.f32 %v2430, %v2440
      %v2444 = vmul.f32 %v2430, %v2441
      %v2445 = vmul.f32 %v2430, %v2442
      %2449 = vrot.lane.b32.xlu0 %v2443, 94
      %v2450 = vpop.permute.xlu0 %2449
      %2451 = vrot.lane.b32.xlu0 %v2444, 94
      %v2452 = vpop.permute.xlu0 %2451
      %2453 = vrot.lane.b32.xlu0 %v2445, 94
      %v2454 = vpop.permute.xlu0 %2453
      %v2455 = vsel %vm1301, %v2450, %v2452
      %v2456 = vsel %vm1301, %v2452, %v2454
      %v2460 = vadd.f32 %v2423, %v2450
      %v2461 = vadd.f32 %v2424, %v2455
      %v2462 = vadd.f32 %v2425, %v2456
      %2463 = vset.pattern.permute.xlu0 33
      %2464 = vperm.xlu0 %2463, %v1426
      %v2465 = vpop.permute.xlu0 %2464
      %v2467 = vperm.slane %v2426, 1
      %v2468 = vperm.slane %v2426, 5
      %v2469 = vperm.slane %v2427, 1
      %v2473 = vperm.slane %v2467, 1
      %v2474 = vperm.slane %v2468, 1
      %v2475 = vperm.slane %v2469, 1
      %v2476 = vmul.f32 %v2465, %v2473
      %v2477 = vmul.f32 %v2465, %v2474
      %v2478 = vmul.f32 %v2465, %v2475
      %2482 = vrot.lane.b32.xlu0 %v2476, 94
      %v2483 = vpop.permute.xlu0 %2482
      %2484 = vrot.lane.b32.xlu0 %v2477, 94
      %v2485 = vpop.permute.xlu0 %2484
      %2486 = vrot.lane.b32.xlu0 %v2478, 94
      %v2487 = vpop.permute.xlu0 %2486
      %v2488 = vsel %vm1301, %v2483, %v2485
      %v2489 = vsel %vm1301, %v2485, %v2487
      %v2493 = vadd.f32 %v2460, %v2483
      %v2494 = vadd.f32 %v2461, %v2488
      %v2495 = vadd.f32 %v2462, %v2489
      %2496 = vset.pattern.permute.xlu0 34
      %2497 = vperm.xlu0 %2496, %v1426
      %v2498 = vpop.permute.xlu0 %2497
      %v2500 = vperm.slane %v2426, 2
      %v2501 = vperm.slane %v2426, 6
      %v2502 = vperm.slane %v2427, 2
      %v2506 = vperm.slane %v2500, 2
      %v2507 = vperm.slane %v2501, 2
      %v2508 = vperm.slane %v2502, 2
      %v2509 = vmul.f32 %v2498, %v2506
      %v2510 = vmul.f32 %v2498, %v2507
      %v2511 = vmul.f32 %v2498, %v2508
      %2515 = vrot.lane.b32.xlu0 %v2509, 94
      %v2516 = vpop.permute.xlu0 %2515
      %2517 = vrot.lane.b32.xlu0 %v2510, 94
      %v2518 = vpop.permute.xlu0 %2517
      %2519 = vrot.lane.b32.xlu0 %v2511, 94
      %v2520 = vpop.permute.xlu0 %2519
      %v2521 = vsel %vm1301, %v2516, %v2518
      %v2522 = vsel %vm1301, %v2518, %v2520
      %v2526 = vadd.f32 %v2493, %v2516
      %v2527 = vadd.f32 %v2494, %v2521
      %v2528 = vadd.f32 %v2495, %v2522
      %2529 = vset.pattern.permute.xlu0 35
      %2530 = vperm.xlu0 %2529, %v1426
      %v2531 = vpop.permute.xlu0 %2530
      %v2533 = vperm.slane %v2426, 3
      %v2534 = vperm.slane %v2426, 7
      %v2535 = vperm.slane %v2427, 3
      %v2539 = vperm.slane %v2533, 3
      %v2540 = vperm.slane %v2534, 3
      %v2541 = vperm.slane %v2535, 3
      %v2542 = vmul.f32 %v2531, %v2539
      %v2543 = vmul.f32 %v2531, %v2540
      %v2544 = vmul.f32 %v2531, %v2541
      %2548 = vrot.lane.b32.xlu0 %v2542, 94
      %v2549 = vpop.permute.xlu0 %2548
      %2550 = vrot.lane.b32.xlu0 %v2543, 94
      %v2551 = vpop.permute.xlu0 %2550
      %2552 = vrot.lane.b32.xlu0 %v2544, 94
      %v2553 = vpop.permute.xlu0 %2552
      %v2554 = vsel %vm1301, %v2549, %v2551
      %v2555 = vsel %vm1301, %v2551, %v2553
      %v2559 = vadd.f32 %v2526, %v2549
      %v2560 = vadd.f32 %v2527, %v2554
      %v2561 = vadd.f32 %v2528, %v2555
      %v2565 = vrot.slane %v2560, 4
      %v2566 = vsel %vm216, %v2559, %v2565
      %2567 = vrot.lane.b32.xlu0 %v2566, 17
      %v2568 = vpop.permute.xlu0 %2567
      %2569 = vrot.lane.b32.xlu0 %v2561, 17
      %v2570 = vpop.permute.xlu0 %2569
      %v2571 = vrot.slane %v2568, 4
      %v2572 = vrot.slane %v2570, 4
      %v2573 = vsel %vm216, %v2571, %v2572
      %v2574 = vsel %vm1268, %v2568, %v2573
      %2576 = vst [vmem:[%s197] sm:$0xff] %v2574
      %p2577 = scmp.lt.s32.totalorder %s15, 1
      %s2578 = scalar_select %p2577, %s15, 1
      %s2579 = smul.addr %s2578, 2
      %s2580 = smul.addr %s2579, 4
      %s2581 = scalar_lea.vmem %s4, %s2580
      // Predicated region
      $region37: #{nopa_conv_forward.1} parent=35 // pred_check
        %p2582 = pneg %p122
      $region38: #{nopa_conv_forward.1} parent=35 // pred_check_branch
        %2584 = sbr.rel (%p2582) target = $region40
      $region39: #{nopa_conv_forward.1} parent=35 // pred_region
        _
      $region40: #{nopa_conv_forward.1} parent=35 // pred_fallthru
        _
    $region36: #{nopa_conv_forward.1} parent=5 // pred_fallthru
      _
    %p2585 = scmp.le.s32.totalorder 2, %s10
    // Predicated region
    $region41: #{nopa_conv_forward.1} parent=5 // pred_check
      %p2586 = pneg %p2585
    $region42: #{nopa_conv_forward.1} parent=5 // pred_check_branch
      %2588 = sbr.rel (%p2586) target = $region44
    $region43: #{nopa_conv_forward.1} parent=5 // pred_region
      %s2589 = ssub.s32 %s10, 2
      // Predicated region
      $region45: #{nopa_conv_forward.1} parent=43 // pred_check
        %p2590 = pneg %p128
      $region46: #{nopa_conv_forward.1} parent=43 // pred_check_branch
        %2592 = sbr.rel (%p2590) target = $region48
      $region47: #{nopa_conv_forward.1} parent=43 // pred_region
        %p2593 = scmp.lt.s32.totalorder %s16, 1
        %s2594 = scalar_select %p2593, %s16, 1
        %s2595 = smul.addr %s2594, 2
        %s2596 = smul.addr %s2595, 4
        %s2597 = scalar_lea.vmem %s4, %s2596
      $region48: #{nopa_conv_forward.1} parent=43 // pred_fallthru
        _
    $region44: #{nopa_conv_forward.1} parent=5 // pred_fallthru
      _
  $region6: #{nopa_conv_forward.1} parent=0 // loop_footer
    %s14 = sadd.s32 1, %s10
  $region7: #{nopa_conv_forward.1} parent=0 // loop_footer_branch
    %9 = sbr.rel target = $region3
  $region8: #{nopa_conv_forward.1} parent=0 // loop_exit
    _

</llo_original>
